<compile_context>
chip_gen: v7x
topology: tpu7x:2x2x1
jax: 0.10.0
libtpu: 0.0.40
codegen_flags: <defaults>
</compile_context>

<pallas_src>
import jax
import jax.numpy as jnp
from jax.experimental import pallas as pl
from jax.experimental.pallas import tpu as pltpu

_L = 128  # lane width used for every feature axis


# ----------------------------------------------------------------------------
# small helpers (wrapper side, run once at prepare time)
# ----------------------------------------------------------------------------
def _round_up(a, m):
    return (a + m - 1) // m * m


def _pick_batch_tile(b, max_bt=128):
    """Batch tile on the sublane/M axis.  Single grid step for typical batches
    (grid is a sequential loop on 1-TC chips); >=2 parallel steps for big ones."""
    bp = _round_up(b, 8)
    bt = min(max_bt, bp)
    bp = _round_up(bp, bt)
    return bp, bt


def _toeplitz_conv_weights(w, win, wout):
    """(cout, cin, k, k) conv weights -> (k, cin*win, cout*wout) matrices T so a
    valid conv along width becomes  out[(oh,b),(co,ow)] = sum_kh X[oh+kh] @ T[kh]."""
    cout, cin, k, _ = w.shape
    iw = jnp.arange(win)
    ow = jnp.arange(wout)
    d = iw[:, None] - ow[None, :]                      # kw = iw - ow
    mask = (d >= 0) & (d < k)
    dcl = jnp.clip(d, 0, k - 1)
    wt = w.transpose(2, 1, 0, 3)                       # (k, cin, cout, kw)
    t = wt[:, :, :, dcl]                               # (k, cin, cout, win, wout)
    t = t.transpose(0, 1, 3, 2, 4) * mask[None, None, :, None, :].astype(w.dtype)
    return t.reshape(k, cin * win, cout * wout)


# ----------------------------------------------------------------------------
# fused kernel
# ----------------------------------------------------------------------------
def _make_fused_kernel(hin, win, k):
    h1o, w1o = hin - k + 1, win - k + 1       # conv1 output spatial (28, 28)
    h1p, w1p = h1o // 2, w1o // 2             # after pool           (14, 14)
    h2o, w2o = h1p - k + 1, w1p - k + 1       # conv2 output spatial (10, 10)
    h2p, w2p = h2o // 2, w2o // 2             # after pool           (5, 5)
    assert h1o % 2 == 0 and w1o % 2 == 0 and h2o % 2 == 0 and w2o % 2 == 0, (
        "pooling trick requires even conv output sizes")

    def kernel(x_ref, w1t_ref, sc1_ref, sh1_ref, w2t_ref, sc2_ref, sh2_ref,
               wfc1_ref, bfc1_ref, wfc2_ref, bfc2_ref, o_ref):
        bt = x_ref.shape[1]
        xx = x_ref[...]                                          # (hin, bt, 128) bf16

        # ---- conv1 + BN1 + ReLU: one K-merged MXU matmul over im2col rows ----
        lhs1 = jnp.concatenate(
            [xx[kh:kh + h1o].reshape(h1o * bt, _L) for kh in range(k)], axis=-1)
        acc = jnp.dot(lhs1, w1t_ref[...], preferred_element_type=jnp.float32)
        y = jnp.maximum(acc * sc1_ref[...] + sh1_ref[...], 0.0)   # (h1o*bt, 128) f32

        # ---- maxpool 2x2: rows via reshape+max; columns via max with -1 roll ----
        y = y.reshape(h1p, 2, bt, _L)
        y = jnp.maximum(y[:, 0], y[:, 1])                         # (h1p, bt, 128)
        p1 = jnp.maximum(y, jnp.roll(y, shift=-1, axis=-1))       # lane-dense 128
        p1 = p1.astype(jnp.bfloat16)
        # pooled (ci, pw) value sits at column ci*w1o + 2*pw; odd/padded columns
        # hold garbage that only multiplies zero rows of w2t below.

        # ---- conv2 + BN2 + ReLU: one K-merged MXU matmul ----
        lhs2 = jnp.concatenate(
            [p1[kh:kh + h2o].reshape(h2o * bt, _L) for kh in range(k)], axis=-1)
        acc = jnp.dot(lhs2, w2t_ref[...], preferred_element_type=jnp.float32)
        y = jnp.maximum(acc * sc2_ref[...] + sh2_ref[...], 0.0)

        y = y.reshape(h2p, 2, bt, _L)
        y = jnp.maximum(y[:, 0], y[:, 1])                         # (h2p, bt, 128)
        p2 = jnp.maximum(y, jnp.roll(y, shift=-1, axis=-1)).astype(jnp.bfloat16)

        # ---- fc1 + ReLU: NCHW flatten folded into wfc1, single matmul ----
        lhs3 = jnp.concatenate([p2[r] for r in range(h2p)], axis=-1)  # (bt, h2p*128)
        h = jnp.dot(lhs3, wfc1_ref[...], preferred_element_type=jnp.float32)
        h = jnp.maximum(h + bfc1_ref[...], 0.0).astype(jnp.bfloat16)

        # ---- fc2: lane-dense (bt, 128) output slab ----
        o_ref[...] = (jnp.dot(h, wfc2_ref[...], preferred_element_type=jnp.float32)
                      + bfc2_ref[...])

    return kernel, (h1o, w1o, h1p, w1p, h2o, w2o, h2p, w2p)


# ----------------------------------------------------------------------------
# one-time weight re-layout (runs once, outside the per-call jit)
# ----------------------------------------------------------------------------
def _prepare_params(params, hin, win, eps=1e-5):
    f32, bf16 = jnp.float32, jnp.bfloat16
    c1, cin, k, _ = params["conv1_w"].shape
    c2 = params["conv2_w"].shape[0]
    n_hidden = params["fc1_w"].shape[0]
    n_actions = params["fc2_w"].shape[0]

    h1o, w1o = hin - k + 1, win - k + 1
    h1p, w1p = h1o // 2, w1o // 2
    h2o, w2o = h1p - k + 1, w1p - k + 1
    h2p, w2p = h2o // 2, w2o // 2
    kw1, kc1, kc2 = cin * win, c1 * w1o, c2 * w2o
    assert kw1 <= _L and kc1 <= _L and kc2 <= _L and n_hidden <= _L
    assert params["fc1_w"].shape[1] == c2 * h2p * w2p

    # conv1 Toeplitz, lane/row padded to 128, kernel rows stacked along K
    t1 = _toeplitz_conv_weights(params["conv1_w"], win, w1o)          # (k, 96, 112)
    w1t = (jnp.zeros((k, _L, _L), f32).at[:, :kw1, :kc1].set(t1)
           .reshape(k * _L, _L).astype(bf16))
    s1 = params["bn1_gamma"] / jnp.sqrt(params["bn1_var"] + eps)
    b1 = params["bn1_beta"] + (params["conv1_b"] - params["bn1_mean"]) * s1
    sc1 = jnp.zeros((1, _L), f32).at[0, :kc1].set(jnp.repeat(s1, w1o))
    sh1 = jnp.zeros((1, _L), f32).at[0, :kc1].set(jnp.repeat(b1, w1o))

    # conv2 Toeplitz reading the sparse pooled columns (ci*w1o + 2*iw)
    t2 = _toeplitz_conv_weights(params["conv2_w"], w1p, w2o)          # (k, 56, 80)
    t2p = jnp.zeros((k, c1 * w1p, _L), f32).at[:, :, :kc2].set(t2)
    rows2 = (jnp.arange(c1)[:, None] * w1o
             + 2 * jnp.arange(w1p)[None, :]).reshape(-1)
    w2t = (jnp.zeros((k, _L, _L), f32).at[:, rows2, :].set(t2p)
           .reshape(k * _L, _L).astype(bf16))
    s2 = params["bn2_gamma"] / jnp.sqrt(params["bn2_var"] + eps)
    b2 = params["bn2_beta"] + (params["conv2_b"] - params["bn2_mean"]) * s2
    sc2 = jnp.zeros((1, _L), f32).at[0, :kc2].set(jnp.repeat(s2, w2o))
    sh2 = jnp.zeros((1, _L), f32).at[0, :kc2].set(jnp.repeat(b2, w2o))

    # fc1: fold the NCHW flatten; read sparse pooled columns (co*w2o + 2*pw)
    wr = params["fc1_w"].reshape(n_hidden, c2, h2p, w2p)
    blocks = wr.transpose(2, 1, 3, 0).reshape(h2p, c2 * w2p, n_hidden)
    blocksp = jnp.zeros((h2p, c2 * w2p, _L), f32).at[:, :, :n_hidden].set(blocks)
    rows3 = (jnp.arange(c2)[:, None] * w2o
             + 2 * jnp.arange(w2p)[None, :]).reshape(-1)
    wfc1 = (jnp.zeros((h2p, _L, _L), f32).at[:, rows3, :].set(blocksp)
            .reshape(h2p * _L, _L).astype(bf16))
    bfc1 = jnp.zeros((1, _L), f32).at[0, :n_hidden].set(params["fc1_b"])

    # fc2: lane-dense padded output
    nap = _round_up(n_actions, _L)
    wfc2 = (jnp.zeros((_L, nap), f32)
            .at[:n_hidden, :n_actions].set(params["fc2_w"].T).astype(bf16))
    bfc2 = jnp.zeros((1, nap), f32).at[0, :n_actions].set(params["fc2_b"])

    weights = (w1t, sc1, sh1, w2t, sc2, sh2, wfc1, bfc1, wfc2, bfc2)
    meta = dict(cin=cin, k=k, n_actions=n_actions, nap=nap, h2p=h2p)
    return weights, meta


# ----------------------------------------------------------------------------
# forward factory: prepare once, return a jitted forward (input layout + kernel)
# ----------------------------------------------------------------------------
def make_lenet_dqn_forward(params, input_hw=(32, 32), eps=1e-5, max_batch_tile=128):
    hin, win = input_hw
    weights, meta = _prepare_params(params, hin, win, eps)
    cin, k = meta["cin"], meta["k"]
    n_actions, nap, h2p = meta["n_actions"], meta["nap"], meta["h2p"]
    kernel, _ = _make_fused_kernel(hin, win, k)

    @jax.jit
    def forward(x):
        b = x.shape[0]
        bp, bt = _pick_batch_tile(b, max_batch_tile)
        # (B, C, H, W) -> (H, B, C*W): batch on sublanes, lanes carry (ci, iw)
        x1 = x.transpose(2, 0, 1, 3).reshape(hin, b, cin * win)
        x1 = jnp.pad(x1, ((0, 0), (0, bp - b), (0, _L - cin * win)))
        x1 = x1.astype(jnp.bfloat16)

        out = pl.pallas_call(
            kernel,
            grid=(bp // bt,),
            in_specs=[
                pl.BlockSpec((hin, bt, _L), lambda i: (0, i, 0)),
                pl.BlockSpec((k * _L, _L), lambda i: (0, 0)),
                pl.BlockSpec((1, _L), lambda i: (0, 0)),
                pl.BlockSpec((1, _L), lambda i: (0, 0)),
                pl.BlockSpec((k * _L, _L), lambda i: (0, 0)),
                pl.BlockSpec((1, _L), lambda i: (0, 0)),
                pl.BlockSpec((1, _L), lambda i: (0, 0)),
                pl.BlockSpec((h2p * _L, _L), lambda i: (0, 0)),
                pl.BlockSpec((1, _L), lambda i: (0, 0)),
                pl.BlockSpec((_L, nap), lambda i: (0, 0)),
                pl.BlockSpec((1, nap), lambda i: (0, 0)),
            ],
            out_specs=pl.BlockSpec((bt, nap), lambda i: (i, 0)),
            out_shape=jax.ShapeDtypeStruct((bp, nap), jnp.float32),
            compiler_params=pltpu.CompilerParams(
                dimension_semantics=("parallel",),
                vmem_limit_bytes=32 * 1024 * 1024),
        )(x1, *weights)
        return out[:b, :n_actions]

    return forward


# ----------------------------------------------------------------------------
# pure-JAX reference (numerical self-check)
# ----------------------------------------------------------------------------
def lenet_dqn_reference(params, x, eps=1e-5):
    def conv(v, w, bias):
        y = jax.lax.conv_general_dilated(
            v, w, window_strides=(1, 1), padding="VALID",
            dimension_numbers=("NCHW", "OIHW", "NCHW"),
            precision=jax.lax.Precision.HIGHEST)
        return y + bias[None, :, None, None]

    def bn(y, g, be, m, v):
        return ((y - m[None, :, None, None])
                / jnp.sqrt(v[None, :, None, None] + eps)
                * g[None, :, None, None] + be[None, :, None, None])

    def pool2(y):
        n, c, h, w = y.shape
        return y.reshape(n, c, h // 2, 2, w // 2, 2).max(axis=(3, 5))

    h = pool2(jnp.maximum(bn(conv(x, params["conv1_w"], params["conv1_b"]),
                             params["bn1_gamma"], params["bn1_beta"],
                             params["bn1_mean"], params["bn1_var"]), 0.0))
    h = pool2(jnp.maximum(bn(conv(h, params["conv2_w"], params["conv2_b"]),
                             params["bn2_gamma"], params["bn2_beta"],
                             params["bn2_mean"], params["bn2_var"]), 0.0))
    f = h.reshape(h.shape[0], -1)
    f = jnp.maximum(f @ params["fc1_w"].T + params["fc1_b"], 0.0)
    return f @ params["fc2_w"].T + params["fc2_b"]


# ----------------------------------------------------------------------------
# parameter init (deterministic)
# ----------------------------------------------------------------------------
def init_params(key, n_actions):
    ks = jax.random.split(key, 16)
    p = {}
    # Conv2d(3, 4, 5) + BatchNorm2d(4)
    p["conv1_w"] = 0.10 * jax.random.normal(ks[0], (4, 3, 5, 5), jnp.float32)
    p["conv1_b"] = 0.05 * jax.random.normal(ks[1], (4,), jnp.float32)
    p["bn1_gamma"] = 1.0 + 0.10 * jax.random.normal(ks[2], (4,), jnp.float32)
    p["bn1_beta"] = 0.05 * jax.random.normal(ks[3], (4,), jnp.float32)
    p["bn1_mean"] = 0.05 * jax.random.normal(ks[4], (4,), jnp.float32)
    p["bn1_var"] = 1.0 + 0.10 * jax.random.uniform(ks[5], (4,), jnp.float32)
    # Conv2d(4, 8, 5) + BatchNorm2d(8)
    p["conv2_w"] = 0.10 * jax.random.normal(ks[6], (8, 4, 5, 5), jnp.float32)
    p["conv2_b"] = 0.05 * jax.random.normal(ks[7], (8,), jnp.float32)
    p["bn2_gamma"] = 1.0 + 0.10 * jax.random.normal(ks[8], (8,), jnp.float32)
    p["bn2_beta"] = 0.05 * jax.random.normal(ks[9], (8,), jnp.float32)
    p["bn2_mean"] = 0.05 * jax.random.normal(ks[10], (8,), jnp.float32)
    p["bn2_var"] = 1.0 + 0.10 * jax.random.uniform(ks[11], (8,), jnp.float32)
    # Linear(8*5*5, 64) and Linear(64, n_actions)
    p["fc1_w"] = 0.10 * jax.random.normal(ks[12], (64, 8 * 5 * 5), jnp.float32)
    p["fc1_b"] = 0.05 * jax.random.normal(ks[13], (64,), jnp.float32)
    p["fc2_w"] = 0.10 * jax.random.normal(ks[14], (n_actions, 64), jnp.float32)
    p["fc2_b"] = 0.05 * jax.random.normal(ks[15], (n_actions,), jnp.float32)
    return p


if __name__ == "__main__":
    n_actions = 4
    key = jax.random.PRNGKey(0)
    pkey, xkey = jax.random.split(key)
    params = init_params(pkey, n_actions)
    # LeNet geometry implies 3x32x32 inputs (32 -> 28 -> 14 -> 10 -> 5).
    x = jax.random.normal(xkey, (2, 3, 32, 32), jnp.float32)

    forward = make_lenet_dqn_forward(params, input_hw=(32, 32))
    q_values = jax.block_until_ready(forward(x))
    assert q_values.shape == (2, n_actions)
    assert bool(jnp.all(jnp.isfinite(q_values)))

    q_ref = lenet_dqn_reference(params, x)
    # Tolerance reflects bf16 MXU operands (f32 accumulation); error is ~1e-2.
    assert bool(jnp.allclose(q_values, q_ref, atol=3e-2, rtol=3e-2)), (
        float(jnp.max(jnp.abs(q_values - q_ref))))
    print("KERNEL_OK")
</pallas_src>

<mosaic_0001>
module attributes {stable_mosaic.version = 11 : i64} {
  func.func @kernel(%arg0: i32, %arg1: memref<32x8x128xbf16, #tpu.memory_space<vmem>>, %arg2: memref<640x128xbf16, #tpu.memory_space<vmem>>, %arg3: memref<1x128xf32, #tpu.memory_space<vmem>>, %arg4: memref<1x128xf32, #tpu.memory_space<vmem>>, %arg5: memref<640x128xbf16, #tpu.memory_space<vmem>>, %arg6: memref<1x128xf32, #tpu.memory_space<vmem>>, %arg7: memref<1x128xf32, #tpu.memory_space<vmem>>, %arg8: memref<640x128xbf16, #tpu.memory_space<vmem>>, %arg9: memref<1x128xf32, #tpu.memory_space<vmem>>, %arg10: memref<128x128xbf16, #tpu.memory_space<vmem>>, %arg11: memref<1x128xf32, #tpu.memory_space<vmem>>, %arg12: memref<8x128xf32, #tpu.memory_space<vmem>>) attributes {dimension_semantics = [#tpu.dimension_semantics<parallel>], iteration_bounds = array<i64: 1>, scalar_prefetch = 0 : i64, scratch_operands = 0 : i64, tpu.core_type = #tpu.core_type<tc>, window_params = [{transform_indices = @transform_0, window_bounds = array<i64: 32, 8, 128>}, {pipeline_mode = #tpu.pipeline_mode<synchronous>, transform_indices = @transform_1, window_bounds = array<i64: 640, 128>}, {pipeline_mode = #tpu.pipeline_mode<synchronous>, transform_indices = @transform_2, window_bounds = array<i64: 1, 128>}, {pipeline_mode = #tpu.pipeline_mode<synchronous>, transform_indices = @transform_3, window_bounds = array<i64: 1, 128>}, {pipeline_mode = #tpu.pipeline_mode<synchronous>, transform_indices = @transform_4, window_bounds = array<i64: 640, 128>}, {pipeline_mode = #tpu.pipeline_mode<synchronous>, transform_indices = @transform_5, window_bounds = array<i64: 1, 128>}, {pipeline_mode = #tpu.pipeline_mode<synchronous>, transform_indices = @transform_6, window_bounds = array<i64: 1, 128>}, {pipeline_mode = #tpu.pipeline_mode<synchronous>, transform_indices = @transform_7, window_bounds = array<i64: 640, 128>}, {pipeline_mode = #tpu.pipeline_mode<synchronous>, transform_indices = @transform_8, window_bounds = array<i64: 1, 128>}, {pipeline_mode = #tpu.pipeline_mode<synchronous>, transform_indices = @transform_9, window_bounds = array<i64: 128, 128>}, {pipeline_mode = #tpu.pipeline_mode<synchronous>, transform_indices = @transform_10, window_bounds = array<i64: 1, 128>}, {transform_indices = @transform_11, window_bounds = array<i64: 8, 128>}]} {
    %c0 = arith.constant 0 : index
    %c0_0 = arith.constant 0 : index
    %c0_1 = arith.constant 0 : index
    %0 = vector.load %arg1[%c0, %c0_0, %c0_1] : memref<32x8x128xbf16, #tpu.memory_space<vmem>>, vector<32x8x128xbf16>
    %1 = vector.extract_strided_slice %0 {offsets = [0, 0, 0], sizes = [28, 8, 128], strides = [1, 1, 1]} : vector<32x8x128xbf16> to vector<28x8x128xbf16>
    %2 = vector.shape_cast %1 : vector<28x8x128xbf16> to vector<224x128xbf16>
    %3 = vector.extract_strided_slice %0 {offsets = [1, 0, 0], sizes = [28, 8, 128], strides = [1, 1, 1]} : vector<32x8x128xbf16> to vector<28x8x128xbf16>
    %4 = vector.shape_cast %3 : vector<28x8x128xbf16> to vector<224x128xbf16>
    %5 = vector.extract_strided_slice %0 {offsets = [2, 0, 0], sizes = [28, 8, 128], strides = [1, 1, 1]} : vector<32x8x128xbf16> to vector<28x8x128xbf16>
    %6 = vector.shape_cast %5 : vector<28x8x128xbf16> to vector<224x128xbf16>
    %7 = vector.extract_strided_slice %0 {offsets = [3, 0, 0], sizes = [28, 8, 128], strides = [1, 1, 1]} : vector<32x8x128xbf16> to vector<28x8x128xbf16>
    %8 = vector.shape_cast %7 : vector<28x8x128xbf16> to vector<224x128xbf16>
    %9 = vector.extract_strided_slice %0 {offsets = [4, 0, 0], sizes = [28, 8, 128], strides = [1, 1, 1]} : vector<32x8x128xbf16> to vector<28x8x128xbf16>
    %10 = vector.shape_cast %9 : vector<28x8x128xbf16> to vector<224x128xbf16>
    %11 = tpu.concatenate %2, %4, %6, %8, %10 in 1 : vector<224x128xbf16>, vector<224x128xbf16>, vector<224x128xbf16>, vector<224x128xbf16>, vector<224x128xbf16> -> vector<224x640xbf16>
    %c0_2 = arith.constant 0 : index
    %c0_3 = arith.constant 0 : index
    %12 = vector.load %arg2[%c0_2, %c0_3] : memref<640x128xbf16, #tpu.memory_space<vmem>>, vector<640x128xbf16>
    %cst = arith.constant dense<0.000000e+00> : vector<224x128xf32>
    %13 = tpu.matmul %11, %12, %cst {dimension_numbers = #tpu.dot_dimension_numbers<[1], [0], [0], [1], [0, 0, 1, 1], [], []>} : vector<224x640xbf16>, vector<640x128xbf16>, vector<224x128xf32> -> vector<224x128xf32>
    %c0_4 = arith.constant 0 : index
    %c0_5 = arith.constant 0 : index
    %14 = vector.load %arg3[%c0_4, %c0_5] : memref<1x128xf32, #tpu.memory_space<vmem>>, vector<1x128xf32>
    %15 = vector.broadcast %14 : vector<1x128xf32> to vector<224x128xf32>
    %16 = arith.mulf %13, %15 : vector<224x128xf32>
    %c0_6 = arith.constant 0 : index
    %c0_7 = arith.constant 0 : index
    %17 = vector.load %arg4[%c0_6, %c0_7] : memref<1x128xf32, #tpu.memory_space<vmem>>, vector<1x128xf32>
    %18 = vector.broadcast %17 : vector<1x128xf32> to vector<224x128xf32>
    %19 = arith.addf %16, %18 : vector<224x128xf32>
    %cst_8 = arith.constant 0.000000e+00 : f32
    %20 = vector.broadcast %cst_8 : f32 to vector<224x128xf32>
    %21 = arith.maximumf %19, %20 : vector<224x128xf32>
    %22 = vector.shape_cast %21 : vector<224x128xf32> to vector<14x2x8x128xf32>
    %23 = vector.extract_strided_slice %22 {offsets = [0, 0, 0, 0], sizes = [14, 1, 8, 128], strides = [1, 1, 1, 1]} : vector<14x2x8x128xf32> to vector<14x1x8x128xf32>
    %24 = vector.shape_cast %23 : vector<14x1x8x128xf32> to vector<14x8x128xf32>
    %25 = vector.extract_strided_slice %22 {offsets = [0, 1, 0, 0], sizes = [14, 1, 8, 128], strides = [1, 1, 1, 1]} : vector<14x2x8x128xf32> to vector<14x1x8x128xf32>
    %26 = vector.shape_cast %25 : vector<14x1x8x128xf32> to vector<14x8x128xf32>
    %27 = arith.maximumf %24, %26 : vector<14x8x128xf32>
    %28 = vector.extract_strided_slice %27 {offsets = [0, 0, 1], sizes = [14, 8, 127], strides = [1, 1, 1]} : vector<14x8x128xf32> to vector<14x8x127xf32>
    %29 = vector.extract_strided_slice %27 {offsets = [0, 0, 0], sizes = [14, 8, 1], strides = [1, 1, 1]} : vector<14x8x128xf32> to vector<14x8x1xf32>
    %30 = tpu.concatenate %28, %29 in 2 : vector<14x8x127xf32>, vector<14x8x1xf32> -> vector<14x8x128xf32>
    %31 = arith.maximumf %27, %30 : vector<14x8x128xf32>
    %32 = arith.truncf %31 : vector<14x8x128xf32> to vector<14x8x128xbf16>
    %33 = vector.extract_strided_slice %32 {offsets = [0, 0, 0], sizes = [10, 8, 128], strides = [1, 1, 1]} : vector<14x8x128xbf16> to vector<10x8x128xbf16>
    %34 = vector.shape_cast %33 : vector<10x8x128xbf16> to vector<80x128xbf16>
    %35 = vector.extract_strided_slice %32 {offsets = [1, 0, 0], sizes = [10, 8, 128], strides = [1, 1, 1]} : vector<14x8x128xbf16> to vector<10x8x128xbf16>
    %36 = vector.shape_cast %35 : vector<10x8x128xbf16> to vector<80x128xbf16>
    %37 = vector.extract_strided_slice %32 {offsets = [2, 0, 0], sizes = [10, 8, 128], strides = [1, 1, 1]} : vector<14x8x128xbf16> to vector<10x8x128xbf16>
    %38 = vector.shape_cast %37 : vector<10x8x128xbf16> to vector<80x128xbf16>
    %39 = vector.extract_strided_slice %32 {offsets = [3, 0, 0], sizes = [10, 8, 128], strides = [1, 1, 1]} : vector<14x8x128xbf16> to vector<10x8x128xbf16>
    %40 = vector.shape_cast %39 : vector<10x8x128xbf16> to vector<80x128xbf16>
    %41 = vector.extract_strided_slice %32 {offsets = [4, 0, 0], sizes = [10, 8, 128], strides = [1, 1, 1]} : vector<14x8x128xbf16> to vector<10x8x128xbf16>
    %42 = vector.shape_cast %41 : vector<10x8x128xbf16> to vector<80x128xbf16>
    %43 = tpu.concatenate %34, %36, %38, %40, %42 in 1 : vector<80x128xbf16>, vector<80x128xbf16>, vector<80x128xbf16>, vector<80x128xbf16>, vector<80x128xbf16> -> vector<80x640xbf16>
    %c0_9 = arith.constant 0 : index
    %c0_10 = arith.constant 0 : index
    %44 = vector.load %arg5[%c0_9, %c0_10] : memref<640x128xbf16, #tpu.memory_space<vmem>>, vector<640x128xbf16>
    %cst_11 = arith.constant dense<0.000000e+00> : vector<80x128xf32>
    %45 = tpu.matmul %43, %44, %cst_11 {dimension_numbers = #tpu.dot_dimension_numbers<[1], [0], [0], [1], [0, 0, 1, 1], [], []>} : vector<80x640xbf16>, vector<640x128xbf16>, vector<80x128xf32> -> vector<80x128xf32>
    %c0_12 = arith.constant 0 : index
    %c0_13 = arith.constant 0 : index
    %46 = vector.load %arg6[%c0_12, %c0_13] : memref<1x128xf32, #tpu.memory_space<vmem>>, vector<1x128xf32>
    %47 = vector.broadcast %46 : vector<1x128xf32> to vector<80x128xf32>
    %48 = arith.mulf %45, %47 : vector<80x128xf32>
    %c0_14 = arith.constant 0 : index
    %c0_15 = arith.constant 0 : index
    %49 = vector.load %arg7[%c0_14, %c0_15] : memref<1x128xf32, #tpu.memory_space<vmem>>, vector<1x128xf32>
    %50 = vector.broadcast %49 : vector<1x128xf32> to vector<80x128xf32>
    %51 = arith.addf %48, %50 : vector<80x128xf32>
    %cst_16 = arith.constant 0.000000e+00 : f32
    %52 = vector.broadcast %cst_16 : f32 to vector<80x128xf32>
    %53 = arith.maximumf %51, %52 : vector<80x128xf32>
    %54 = vector.shape_cast %53 : vector<80x128xf32> to vector<5x2x8x128xf32>
    %55 = vector.extract_strided_slice %54 {offsets = [0, 0, 0, 0], sizes = [5, 1, 8, 128], strides = [1, 1, 1, 1]} : vector<5x2x8x128xf32> to vector<5x1x8x128xf32>
    %56 = vector.shape_cast %55 : vector<5x1x8x128xf32> to vector<5x8x128xf32>
    %57 = vector.extract_strided_slice %54 {offsets = [0, 1, 0, 0], sizes = [5, 1, 8, 128], strides = [1, 1, 1, 1]} : vector<5x2x8x128xf32> to vector<5x1x8x128xf32>
    %58 = vector.shape_cast %57 : vector<5x1x8x128xf32> to vector<5x8x128xf32>
    %59 = arith.maximumf %56, %58 : vector<5x8x128xf32>
    %60 = vector.extract_strided_slice %59 {offsets = [0, 0, 1], sizes = [5, 8, 127], strides = [1, 1, 1]} : vector<5x8x128xf32> to vector<5x8x127xf32>
    %61 = vector.extract_strided_slice %59 {offsets = [0, 0, 0], sizes = [5, 8, 1], strides = [1, 1, 1]} : vector<5x8x128xf32> to vector<5x8x1xf32>
    %62 = tpu.concatenate %60, %61 in 2 : vector<5x8x127xf32>, vector<5x8x1xf32> -> vector<5x8x128xf32>
    %63 = arith.maximumf %59, %62 : vector<5x8x128xf32>
    %64 = arith.truncf %63 : vector<5x8x128xf32> to vector<5x8x128xbf16>
    %65 = vector.extract_strided_slice %64 {offsets = [0, 0, 0], sizes = [1, 8, 128], strides = [1, 1, 1]} : vector<5x8x128xbf16> to vector<1x8x128xbf16>
    %66 = vector.shape_cast %65 : vector<1x8x128xbf16> to vector<8x128xbf16>
    %67 = vector.extract_strided_slice %64 {offsets = [1, 0, 0], sizes = [1, 8, 128], strides = [1, 1, 1]} : vector<5x8x128xbf16> to vector<1x8x128xbf16>
    %68 = vector.shape_cast %67 : vector<1x8x128xbf16> to vector<8x128xbf16>
    %69 = vector.extract_strided_slice %64 {offsets = [2, 0, 0], sizes = [1, 8, 128], strides = [1, 1, 1]} : vector<5x8x128xbf16> to vector<1x8x128xbf16>
    %70 = vector.shape_cast %69 : vector<1x8x128xbf16> to vector<8x128xbf16>
    %71 = vector.extract_strided_slice %64 {offsets = [3, 0, 0], sizes = [1, 8, 128], strides = [1, 1, 1]} : vector<5x8x128xbf16> to vector<1x8x128xbf16>
    %72 = vector.shape_cast %71 : vector<1x8x128xbf16> to vector<8x128xbf16>
    %73 = vector.extract_strided_slice %64 {offsets = [4, 0, 0], sizes = [1, 8, 128], strides = [1, 1, 1]} : vector<5x8x128xbf16> to vector<1x8x128xbf16>
    %74 = vector.shape_cast %73 : vector<1x8x128xbf16> to vector<8x128xbf16>
    %75 = tpu.concatenate %66, %68, %70, %72, %74 in 1 : vector<8x128xbf16>, vector<8x128xbf16>, vector<8x128xbf16>, vector<8x128xbf16>, vector<8x128xbf16> -> vector<8x640xbf16>
    %c0_17 = arith.constant 0 : index
    %c0_18 = arith.constant 0 : index
    %76 = vector.load %arg8[%c0_17, %c0_18] : memref<640x128xbf16, #tpu.memory_space<vmem>>, vector<640x128xbf16>
    %cst_19 = arith.constant dense<0.000000e+00> : vector<8x128xf32>
    %77 = tpu.matmul %75, %76, %cst_19 {dimension_numbers = #tpu.dot_dimension_numbers<[1], [0], [0], [1], [0, 0, 1, 1], [], []>} : vector<8x640xbf16>, vector<640x128xbf16>, vector<8x128xf32> -> vector<8x128xf32>
    %c0_20 = arith.constant 0 : index
    %c0_21 = arith.constant 0 : index
    %78 = vector.load %arg9[%c0_20, %c0_21] : memref<1x128xf32, #tpu.memory_space<vmem>>, vector<1x128xf32>
    %79 = vector.broadcast %78 : vector<1x128xf32> to vector<8x128xf32>
    %80 = arith.addf %77, %79 : vector<8x128xf32>
    %cst_22 = arith.constant 0.000000e+00 : f32
    %81 = vector.broadcast %cst_22 : f32 to vector<8x128xf32>
    %82 = arith.maximumf %80, %81 : vector<8x128xf32>
    %83 = arith.truncf %82 : vector<8x128xf32> to vector<8x128xbf16>
    %c0_23 = arith.constant 0 : index
    %c0_24 = arith.constant 0 : index
    %84 = vector.load %arg10[%c0_23, %c0_24] : memref<128x128xbf16, #tpu.memory_space<vmem>>, vector<128x128xbf16>
    %cst_25 = arith.constant dense<0.000000e+00> : vector<8x128xf32>
    %85 = tpu.matmul %83, %84, %cst_25 {dimension_numbers = #tpu.dot_dimension_numbers<[1], [0], [0], [1], [0, 0, 1, 1], [], []>} : vector<8x128xbf16>, vector<128x128xbf16>, vector<8x128xf32> -> vector<8x128xf32>
    %c0_26 = arith.constant 0 : index
    %c0_27 = arith.constant 0 : index
    %86 = vector.load %arg11[%c0_26, %c0_27] : memref<1x128xf32, #tpu.memory_space<vmem>>, vector<1x128xf32>
    %87 = vector.broadcast %86 : vector<1x128xf32> to vector<8x128xf32>
    %88 = arith.addf %85, %87 : vector<8x128xf32>
    %c0_28 = arith.constant 0 : index
    %c0_29 = arith.constant 0 : index
    %89 = vector.load %arg12[%c0_28, %c0_29] : memref<8x128xf32, #tpu.memory_space<vmem>>, vector<8x128xf32>
    tpu.vector_store %arg12[%c0_28, %c0_29], %88 {strides = array<i32>} : memref<8x128xf32, #tpu.memory_space<vmem>>, vector<8x128xf32>,
    return
  }
  func.func @transform_0(%arg0: i32) -> (i32, i32, i32) {
    %c0_i32 = arith.constant 0 : i32
    %c0_i32_0 = arith.constant 0 : i32
    %c0_i32_1 = arith.constant 0 : i32
    return %c0_i32, %arg0, %c0_i32_0 : i32, i32, i32
  }
  func.func @transform_1(%arg0: i32) -> (i32, i32) {
    %c0_i32 = arith.constant 0 : i32
    %c0_i32_0 = arith.constant 0 : i32
    %c0_i32_1 = arith.constant 0 : i32
    return %c0_i32, %c0_i32_0 : i32, i32
  }
  func.func @transform_2(%arg0: i32) -> (i32, i32) {
    %c0_i32 = arith.constant 0 : i32
    %c0_i32_0 = arith.constant 0 : i32
    %c0_i32_1 = arith.constant 0 : i32
    return %c0_i32, %c0_i32_0 : i32, i32
  }
  func.func @transform_3(%arg0: i32) -> (i32, i32) {
    %c0_i32 = arith.constant 0 : i32
    %c0_i32_0 = arith.constant 0 : i32
    %c0_i32_1 = arith.constant 0 : i32
    return %c0_i32, %c0_i32_0 : i32, i32
  }
  func.func @transform_4(%arg0: i32) -> (i32, i32) {
    %c0_i32 = arith.constant 0 : i32
    %c0_i32_0 = arith.constant 0 : i32
    %c0_i32_1 = arith.constant 0 : i32
    return %c0_i32, %c0_i32_0 : i32, i32
  }
  func.func @transform_5(%arg0: i32) -> (i32, i32) {
    %c0_i32 = arith.constant 0 : i32
    %c0_i32_0 = arith.constant 0 : i32
    %c0_i32_1 = arith.constant 0 : i32
    return %c0_i32, %c0_i32_0 : i32, i32
  }
  func.func @transform_6(%arg0: i32) -> (i32, i32) {
    %c0_i32 = arith.constant 0 : i32
    %c0_i32_0 = arith.constant 0 : i32
    %c0_i32_1 = arith.constant 0 : i32
    return %c0_i32, %c0_i32_0 : i32, i32
  }
  func.func @transform_7(%arg0: i32) -> (i32, i32) {
    %c0_i32 = arith.constant 0 : i32
    %c0_i32_0 = arith.constant 0 : i32
    %c0_i32_1 = arith.constant 0 : i32
    return %c0_i32, %c0_i32_0 : i32, i32
  }
  func.func @transform_8(%arg0: i32) -> (i32, i32) {
    %c0_i32 = arith.constant 0 : i32
    %c0_i32_0 = arith.constant 0 : i32
    %c0_i32_1 = arith.constant 0 : i32
    return %c0_i32, %c0_i32_0 : i32, i32
  }
  func.func @transform_9(%arg0: i32) -> (i32, i32) {
    %c0_i32 = arith.constant 0 : i32
    %c0_i32_0 = arith.constant 0 : i32
    %c0_i32_1 = arith.constant 0 : i32
    return %c0_i32, %c0_i32_0 : i32, i32
  }
  func.func @transform_10(%arg0: i32) -> (i32, i32) {
    %c0_i32 = arith.constant 0 : i32
    %c0_i32_0 = arith.constant 0 : i32
    %c0_i32_1 = arith.constant 0 : i32
    return %c0_i32, %c0_i32_0 : i32, i32
  }
  func.func @transform_11(%arg0: i32) -> (i32, i32) {
    %c0_i32 = arith.constant 0 : i32
    %c0_i32_0 = arith.constant 0 : i32
    return %arg0, %c0_i32 : i32, i32
  }
}

</mosaic_0001>

<llo_original>
// kernel: forward.1
$region0: #{forward.1}
  #allocation0 [shape = 'u32[]', space=smem, size = 0x4, offset = 0x4, fixed_abs, tag = 'smem constant byte address 0x4 - core index']
  #allocation1 [shape = 'u32[144,128]{1,0:T(1,128)}', space=vmem, size = 0x12000, scoped, tag = 'internal scratch']
  %s0 = inlined_call_operand.vmem [shape: bf16[32,8,128], index: 0, kind: input, shape index: {}]
  %s1 = inlined_call_operand.hbm [shape: bf16[640,128], index: 1, kind: input, shape index: {}]
  %s2 = inlined_call_operand.vmem [shape: f32[1,128], index: 2, kind: input, shape index: {}]
  %s3 = inlined_call_operand.vmem [shape: f32[1,128], index: 3, kind: input, shape index: {}]
  %s4 = inlined_call_operand.vmem [shape: bf16[640,128], index: 4, kind: input, shape index: {}]
  %s5 = inlined_call_operand.vmem [shape: f32[1,128], index: 5, kind: input, shape index: {}]
  %s6 = inlined_call_operand.vmem [shape: f32[1,128], index: 6, kind: input, shape index: {}]
  %s7 = inlined_call_operand.vmem [shape: bf16[640,128], index: 7, kind: input, shape index: {}]
  %s8 = inlined_call_operand.vmem [shape: f32[1,128], index: 8, kind: input, shape index: {}]
  %s9 = inlined_call_operand.vmem [shape: bf16[128,128], index: 9, kind: input, shape index: {}]
  %s10 = inlined_call_operand.vmem [shape: f32[1,128], index: 10, kind: input, shape index: {}]
  %s11 = inlined_call_operand.vmem [shape: f32[8,128], index: 11, kind: output, shape index: {}]
  %s12 = sld [smem:[#allocation0]]
  $region58: #{forward.1} parent=0
    _
  %s14 = ssub.s32 1, %s12
  %s15 = scalar_select 0, %s14, %s12
  $region1: #{forward.1} parent=0
    #allocation2 [shape = 'u8[163840]{0}', space=vmem, size = 0x28000, scoped, tag = 'input window, operand 1, single buffered']
    #allocation3 [shape = 's32[1]{0}', space=sflag, size = 0x4, scoped, tag = 'scoped memory for forward.1']
    %16 = vsyncpa [#allocation3], 0
    // Predicated region
    $region2: #{forward.1} parent=1 // pred_check
      _
    $region3: #{forward.1} parent=1 // pred_check_branch
      %18 = sbr.rel (0) target = $region5
    $region4: #{forward.1} parent=1 // pred_region
      _
    $region5: #{forward.1} parent=1 // pred_fallthru
      _
    // Predicated region
    $region6: #{forward.1} parent=1 // pred_check
      _
    $region7: #{forward.1} parent=1 // pred_check_branch
      %20 = sbr.rel (0) target = $region9
    $region8: #{forward.1} parent=1 // pred_region
      %s22 = ssub.s32 5120, 5120
      %23 = vsyncadd [#allocation3], %s22
      %s24 = sshll.u32 [#allocation2], 4
      %s25 = int_to_ptr.vmem [resolvable:$true] %s24
      %30 = dma.hbm_to_vmem [thread:$0]  %s1, 5120, %s25, [#allocation3], 64, 64, 4
    $region9: #{forward.1} parent=1 // pred_fallthru
      _
    // Predicated region
    $region10: #{forward.1} parent=1 // pred_check
      _
    $region11: #{forward.1} parent=1 // pred_check_branch
      %32 = sbr.rel (0) target = $region13
    $region12: #{forward.1} parent=1 // pred_region
      _
    $region13: #{forward.1} parent=1 // pred_fallthru
      _
    // Predicated region
    $region14: #{forward.1} parent=1 // pred_check
      _
    $region15: #{forward.1} parent=1 // pred_check_branch
      %34 = sbr.rel (0) target = $region17
    $region16: #{forward.1} parent=1 // pred_region
      _
    $region17: #{forward.1} parent=1 // pred_fallthru
      _
    // Predicated region
    $region18: #{forward.1} parent=1 // pred_check
      _
    $region19: #{forward.1} parent=1 // pred_check_branch
      %36 = sbr.rel (0) target = $region21
    $region20: #{forward.1} parent=1 // pred_region
      _
    $region21: #{forward.1} parent=1 // pred_fallthru
      _
    // Predicated region
    $region22: #{forward.1} parent=1 // pred_check
      _
    $region23: #{forward.1} parent=1 // pred_check_branch
      %38 = sbr.rel (0) target = $region25
    $region24: #{forward.1} parent=1 // pred_region
      _
    $region25: #{forward.1} parent=1 // pred_fallthru
      _
    // Predicated region
    $region26: #{forward.1} parent=1 // pred_check
      _
    $region27: #{forward.1} parent=1 // pred_check_branch
      %40 = sbr.rel (0) target = $region29
    $region28: #{forward.1} parent=1 // pred_region
      _
    $region29: #{forward.1} parent=1 // pred_fallthru
      _
    // Predicated region
    $region30: #{forward.1} parent=1 // pred_check
      _
    $region31: #{forward.1} parent=1 // pred_check_branch
      %42 = sbr.rel (0) target = $region33
    $region32: #{forward.1} parent=1 // pred_region
      _
    $region33: #{forward.1} parent=1 // pred_fallthru
      _
    // Predicated region
    $region34: #{forward.1} parent=1 // pred_check
      _
    $region35: #{forward.1} parent=1 // pred_check_branch
      %44 = sbr.rel (0) target = $region37
    $region36: #{forward.1} parent=1 // pred_region
      _
    $region37: #{forward.1} parent=1 // pred_fallthru
      _
    // Predicated region
    $region38: #{forward.1} parent=1 // pred_check
      _
    $region39: #{forward.1} parent=1 // pred_check_branch
      %46 = sbr.rel (0) target = $region41
    $region40: #{forward.1} parent=1 // pred_region
      _
    $region41: #{forward.1} parent=1 // pred_fallthru
      _
    // Predicated region
    $region42: #{forward.1} parent=1 // pred_check
      _
    $region43: #{forward.1} parent=1 // pred_check_branch
      %48 = sbr.rel (0) target = $region45
    $region44: #{forward.1} parent=1 // pred_region
      _
    $region45: #{forward.1} parent=1 // pred_fallthru
      _
    // Predicated region
    $region46: #{forward.1} parent=1 // pred_check
      _
    $region47: #{forward.1} parent=1 // pred_check_branch
      %50 = sbr.rel (0) target = $region49
    $region48: #{forward.1} parent=1 // pred_region
      %51 = dma.done [#allocation3], 5120
    $region49: #{forward.1} parent=1 // pred_fallthru
      _
    %v53 = vld [vmem:[%s0] sm:$0xf]
    %v54 = vld [vmem:[%s0 + $0x4] sm:$0xf]
    %v55 = vld [vmem:[%s0 + $0x8] sm:$0xf]
    %v56 = vld [vmem:[%s0 + $0xc] sm:$0xf]
    %v57 = vld [vmem:[%s0 + $0x10] sm:$0xf]
    %v58 = vld [vmem:[%s0 + $0x14] sm:$0xf]
    %v59 = vld [vmem:[%s0 + $0x18] sm:$0xf]
    %v60 = vld [vmem:[%s0 + $0x1c] sm:$0xf]
    %v61 = vld [vmem:[%s0 + $0x20] sm:$0xf]
    %v62 = vld [vmem:[%s0 + $0x24] sm:$0xf]
    %v63 = vld [vmem:[%s0 + $0x28] sm:$0xf]
    %v64 = vld [vmem:[%s0 + $0x2c] sm:$0xf]
    %v65 = vld [vmem:[%s0 + $0x30] sm:$0xf]
    %v66 = vld [vmem:[%s0 + $0x34] sm:$0xf]
    %v67 = vld [vmem:[%s0 + $0x38] sm:$0xf]
    %v68 = vld [vmem:[%s0 + $0x3c] sm:$0xf]
    %v69 = vld [vmem:[%s0 + $0x40] sm:$0xf]
    %v70 = vld [vmem:[%s0 + $0x44] sm:$0xf]
    %v71 = vld [vmem:[%s0 + $0x48] sm:$0xf]
    %v72 = vld [vmem:[%s0 + $0x4c] sm:$0xf]
    %v73 = vld [vmem:[%s0 + $0x50] sm:$0xf]
    %v74 = vld [vmem:[%s0 + $0x54] sm:$0xf]
    %v75 = vld [vmem:[%s0 + $0x58] sm:$0xf]
    %v76 = vld [vmem:[%s0 + $0x5c] sm:$0xf]
    %v77 = vld [vmem:[%s0 + $0x60] sm:$0xf]
    %v78 = vld [vmem:[%s0 + $0x64] sm:$0xf]
    %v79 = vld [vmem:[%s0 + $0x68] sm:$0xf]
    %v80 = vld [vmem:[%s0 + $0x6c] sm:$0xf]
    %v81 = vld [vmem:[%s0 + $0x70] sm:$0xf]
    %v82 = vld [vmem:[%s0 + $0x74] sm:$0xf]
    %v83 = vld [vmem:[%s0 + $0x78] sm:$0xf]
    %v84 = vld [vmem:[%s0 + $0x7c] sm:$0xf]
    %v113 = vunpack.c.l.b16 %v53
    %v114 = vunpack.c.l.b16 %v54
    %v115 = vunpack.c.l.b16 %v55
    %v116 = vunpack.c.l.b16 %v56
    %v117 = vunpack.c.l.b16 %v57
    %v118 = vunpack.c.l.b16 %v58
    %v119 = vunpack.c.l.b16 %v59
    %v120 = vunpack.c.l.b16 %v60
    %v121 = vunpack.c.l.b16 %v61
    %v122 = vunpack.c.l.b16 %v62
    %v123 = vunpack.c.l.b16 %v63
    %v124 = vunpack.c.l.b16 %v64
    %v125 = vunpack.c.l.b16 %v65
    %v126 = vunpack.c.l.b16 %v66
    %v127 = vunpack.c.l.b16 %v67
    %v128 = vunpack.c.l.b16 %v68
    %v129 = vunpack.c.l.b16 %v69
    %v130 = vunpack.c.l.b16 %v70
    %v131 = vunpack.c.l.b16 %v71
    %v132 = vunpack.c.l.b16 %v72
    %v133 = vunpack.c.l.b16 %v73
    %v134 = vunpack.c.l.b16 %v74
    %v135 = vunpack.c.l.b16 %v75
    %v136 = vunpack.c.l.b16 %v76
    %v137 = vunpack.c.l.b16 %v77
    %v138 = vunpack.c.l.b16 %v78
    %v139 = vunpack.c.l.b16 %v79
    %v140 = vunpack.c.l.b16 %v80
    %v141 = vpack.c.b16 %v114, %v113
    %v142 = vpack.c.b16 %v116, %v115
    %v143 = vpack.c.b16 %v118, %v117
    %v144 = vpack.c.b16 %v120, %v119
    %v145 = vpack.c.b16 %v122, %v121
    %v146 = vpack.c.b16 %v124, %v123
    %v147 = vpack.c.b16 %v126, %v125
    %v148 = vpack.c.b16 %v128, %v127
    %v149 = vpack.c.b16 %v130, %v129
    %v150 = vpack.c.b16 %v132, %v131
    %v151 = vpack.c.b16 %v134, %v133
    %v152 = vpack.c.b16 %v136, %v135
    %v153 = vpack.c.b16 %v138, %v137
    %v154 = vpack.c.b16 %v140, %v139
    %v170 = vunpack.c.l.b16 %v81
    %v171 = vpack.c.b16 %v115, %v114
    %v172 = vpack.c.b16 %v117, %v116
    %v173 = vpack.c.b16 %v119, %v118
    %v174 = vpack.c.b16 %v121, %v120
    %v175 = vpack.c.b16 %v123, %v122
    %v176 = vpack.c.b16 %v125, %v124
    %v177 = vpack.c.b16 %v127, %v126
    %v178 = vpack.c.b16 %v129, %v128
    %v179 = vpack.c.b16 %v131, %v130
    %v180 = vpack.c.b16 %v133, %v132
    %v181 = vpack.c.b16 %v135, %v134
    %v182 = vpack.c.b16 %v137, %v136
    %v183 = vpack.c.b16 %v139, %v138
    %v184 = vpack.c.b16 %v170, %v140
    %v200 = vunpack.c.l.b16 %v82
    %v201 = vpack.c.b16 %v200, %v170
    %v204 = vunpack.c.l.b16 %v83
    %v205 = vpack.c.b16 %v204, %v200
    %v208 = vunpack.c.l.b16 %v84
    %v209 = vpack.c.b16 %v208, %v204
    %v211 = vld [vmem:[#allocation2] sm:$0xf]
    %v212 = vld [vmem:[#allocation2 + $0x4] sm:$0xf]
    %v213 = vld [vmem:[#allocation2 + $0x8] sm:$0xf]
    %v214 = vld [vmem:[#allocation2 + $0xc] sm:$0xf]
    %v215 = vld [vmem:[#allocation2 + $0x10] sm:$0xf]
    %v216 = vld [vmem:[#allocation2 + $0x14] sm:$0xf]
    %v217 = vld [vmem:[#allocation2 + $0x18] sm:$0xf]
    %v218 = vld [vmem:[#allocation2 + $0x1c] sm:$0xf]
    %v219 = vld [vmem:[#allocation2 + $0x20] sm:$0xf]
    %v220 = vld [vmem:[#allocation2 + $0x24] sm:$0xf]
    %v221 = vld [vmem:[#allocation2 + $0x28] sm:$0xf]
    %v222 = vld [vmem:[#allocation2 + $0x2c] sm:$0xf]
    %v223 = vld [vmem:[#allocation2 + $0x30] sm:$0xf]
    %v224 = vld [vmem:[#allocation2 + $0x34] sm:$0xf]
    %v225 = vld [vmem:[#allocation2 + $0x38] sm:$0xf]
    %v226 = vld [vmem:[#allocation2 + $0x3c] sm:$0xf]
    %v227 = vld [vmem:[#allocation2 + $0x40] sm:$0xf]
    %v228 = vld [vmem:[#allocation2 + $0x44] sm:$0xf]
    %v229 = vld [vmem:[#allocation2 + $0x48] sm:$0xf]
    %v230 = vld [vmem:[#allocation2 + $0x4c] sm:$0xf]
    %v231 = vld [vmem:[#allocation2 + $0x50] sm:$0xf]
    %v232 = vld [vmem:[#allocation2 + $0x54] sm:$0xf]
    %v233 = vld [vmem:[#allocation2 + $0x58] sm:$0xf]
    %v234 = vld [vmem:[#allocation2 + $0x5c] sm:$0xf]
    %v235 = vld [vmem:[#allocation2 + $0x60] sm:$0xf]
    %v236 = vld [vmem:[#allocation2 + $0x64] sm:$0xf]
    %v237 = vld [vmem:[#allocation2 + $0x68] sm:$0xf]
    %v238 = vld [vmem:[#allocation2 + $0x6c] sm:$0xf]
    %v239 = vld [vmem:[#allocation2 + $0x70] sm:$0xf]
    %v240 = vld [vmem:[#allocation2 + $0x74] sm:$0xf]
    %v241 = vld [vmem:[#allocation2 + $0x78] sm:$0xf]
    %v242 = vld [vmem:[#allocation2 + $0x7c] sm:$0xf]
    %v243 = vld [vmem:[#allocation2 + $0x80] sm:$0xf]
    %v244 = vld [vmem:[#allocation2 + $0x84] sm:$0xf]
    %v245 = vld [vmem:[#allocation2 + $0x88] sm:$0xf]
    %v246 = vld [vmem:[#allocation2 + $0x8c] sm:$0xf]
    %v247 = vld [vmem:[#allocation2 + $0x90] sm:$0xf]
    %v248 = vld [vmem:[#allocation2 + $0x94] sm:$0xf]
    %v249 = vld [vmem:[#allocation2 + $0x98] sm:$0xf]
    %v250 = vld [vmem:[#allocation2 + $0x9c] sm:$0xf]
    %v251 = vld [vmem:[#allocation2 + $0xa0] sm:$0xf]
    %v252 = vld [vmem:[#allocation2 + $0xa4] sm:$0xf]
    %v253 = vld [vmem:[#allocation2 + $0xa8] sm:$0xf]
    %v254 = vld [vmem:[#allocation2 + $0xac] sm:$0xf]
    %v255 = vld [vmem:[#allocation2 + $0xb0] sm:$0xf]
    %v256 = vld [vmem:[#allocation2 + $0xb4] sm:$0xf]
    %v257 = vld [vmem:[#allocation2 + $0xb8] sm:$0xf]
    %v258 = vld [vmem:[#allocation2 + $0xbc] sm:$0xf]
    %v259 = vld [vmem:[#allocation2 + $0xc0] sm:$0xf]
    %v260 = vld [vmem:[#allocation2 + $0xc4] sm:$0xf]
    %v261 = vld [vmem:[#allocation2 + $0xc8] sm:$0xf]
    %v262 = vld [vmem:[#allocation2 + $0xcc] sm:$0xf]
    %v263 = vld [vmem:[#allocation2 + $0xd0] sm:$0xf]
    %v264 = vld [vmem:[#allocation2 + $0xd4] sm:$0xf]
    %v265 = vld [vmem:[#allocation2 + $0xd8] sm:$0xf]
    %v266 = vld [vmem:[#allocation2 + $0xdc] sm:$0xf]
    %v267 = vld [vmem:[#allocation2 + $0xe0] sm:$0xf]
    %v268 = vld [vmem:[#allocation2 + $0xe4] sm:$0xf]
    %v269 = vld [vmem:[#allocation2 + $0xe8] sm:$0xf]
    %v270 = vld [vmem:[#allocation2 + $0xec] sm:$0xf]
    %v271 = vld [vmem:[#allocation2 + $0xf0] sm:$0xf]
    %v272 = vld [vmem:[#allocation2 + $0xf4] sm:$0xf]
    %v273 = vld [vmem:[#allocation2 + $0xf8] sm:$0xf]
    %v274 = vld [vmem:[#allocation2 + $0xfc] sm:$0xf]
    %v275 = vld [vmem:[#allocation2 + $0x100] sm:$0xf]
    %v276 = vld [vmem:[#allocation2 + $0x104] sm:$0xf]
    %v277 = vld [vmem:[#allocation2 + $0x108] sm:$0xf]
    %v278 = vld [vmem:[#allocation2 + $0x10c] sm:$0xf]
    %v279 = vld [vmem:[#allocation2 + $0x110] sm:$0xf]
    %v280 = vld [vmem:[#allocation2 + $0x114] sm:$0xf]
    %v281 = vld [vmem:[#allocation2 + $0x118] sm:$0xf]
    %v282 = vld [vmem:[#allocation2 + $0x11c] sm:$0xf]
    %v283 = vld [vmem:[#allocation2 + $0x120] sm:$0xf]
    %v284 = vld [vmem:[#allocation2 + $0x124] sm:$0xf]
    %v285 = vld [vmem:[#allocation2 + $0x128] sm:$0xf]
    %v286 = vld [vmem:[#allocation2 + $0x12c] sm:$0xf]
    %v287 = vld [vmem:[#allocation2 + $0x130] sm:$0xf]
    %v288 = vld [vmem:[#allocation2 + $0x134] sm:$0xf]
    %v289 = vld [vmem:[#allocation2 + $0x138] sm:$0xf]
    %v290 = vld [vmem:[#allocation2 + $0x13c] sm:$0xf]
    %v371 = vunpack.c.l.b16 %v211
    %v372 = vunpack.c.l.b16 %v212
    %v373 = vunpack.c.l.b16 %v213
    %v374 = vunpack.c.l.b16 %v214
    %v375 = vunpack.c.l.b16 %v215
    %v376 = vunpack.c.l.b16 %v216
    %v377 = vunpack.c.l.b16 %v217
    %v378 = vunpack.c.l.b16 %v218
    %v379 = vunpack.c.l.b16 %v219
    %v380 = vunpack.c.l.b16 %v220
    %v381 = vunpack.c.l.b16 %v221
    %v382 = vunpack.c.l.b16 %v222
    %v383 = vunpack.c.l.b16 %v223
    %v384 = vunpack.c.l.b16 %v224
    %v385 = vunpack.c.l.b16 %v225
    %v386 = vunpack.c.l.b16 %v226
    %v387 = vunpack.c.l.b16 %v227
    %v388 = vunpack.c.l.b16 %v228
    %v389 = vunpack.c.l.b16 %v229
    %v390 = vunpack.c.l.b16 %v230
    %v391 = vunpack.c.l.b16 %v231
    %v392 = vunpack.c.l.b16 %v232
    %v393 = vunpack.c.l.b16 %v233
    %v394 = vunpack.c.l.b16 %v234
    %v395 = vunpack.c.l.b16 %v235
    %v396 = vunpack.c.l.b16 %v236
    %v397 = vunpack.c.l.b16 %v237
    %v398 = vunpack.c.l.b16 %v238
    %v399 = vunpack.c.l.b16 %v239
    %v400 = vunpack.c.l.b16 %v240
    %v401 = vunpack.c.l.b16 %v241
    %v402 = vunpack.c.l.b16 %v242
    %v403 = vunpack.c.l.b16 %v243
    %v404 = vunpack.c.l.b16 %v244
    %v405 = vunpack.c.l.b16 %v245
    %v406 = vunpack.c.l.b16 %v246
    %v407 = vunpack.c.l.b16 %v247
    %v408 = vunpack.c.l.b16 %v248
    %v409 = vunpack.c.l.b16 %v249
    %v410 = vunpack.c.l.b16 %v250
    %v411 = vunpack.c.l.b16 %v251
    %v412 = vunpack.c.l.b16 %v252
    %v413 = vunpack.c.l.b16 %v253
    %v414 = vunpack.c.l.b16 %v254
    %v415 = vunpack.c.l.b16 %v255
    %v416 = vunpack.c.l.b16 %v256
    %v417 = vunpack.c.l.b16 %v257
    %v418 = vunpack.c.l.b16 %v258
    %v419 = vunpack.c.l.b16 %v259
    %v420 = vunpack.c.l.b16 %v260
    %v421 = vunpack.c.l.b16 %v261
    %v422 = vunpack.c.l.b16 %v262
    %v423 = vunpack.c.l.b16 %v263
    %v424 = vunpack.c.l.b16 %v264
    %v425 = vunpack.c.l.b16 %v265
    %v426 = vunpack.c.l.b16 %v266
    %v427 = vunpack.c.l.b16 %v267
    %v428 = vunpack.c.l.b16 %v268
    %v429 = vunpack.c.l.b16 %v269
    %v430 = vunpack.c.l.b16 %v270
    %v431 = vunpack.c.l.b16 %v271
    %v432 = vunpack.c.l.b16 %v272
    %v433 = vunpack.c.l.b16 %v273
    %v434 = vunpack.c.l.b16 %v274
    %v435 = vunpack.c.l.b16 %v275
    %v436 = vunpack.c.l.b16 %v276
    %v437 = vunpack.c.l.b16 %v277
    %v438 = vunpack.c.l.b16 %v278
    %v439 = vunpack.c.l.b16 %v279
    %v440 = vunpack.c.l.b16 %v280
    %v441 = vunpack.c.l.b16 %v281
    %v442 = vunpack.c.l.b16 %v282
    %v443 = vunpack.c.l.b16 %v283
    %v444 = vunpack.c.l.b16 %v284
    %v445 = vunpack.c.l.b16 %v285
    %v446 = vunpack.c.l.b16 %v286
    %v447 = vunpack.c.l.b16 %v287
    %v448 = vunpack.c.l.b16 %v288
    %v449 = vunpack.c.l.b16 %v289
    %v450 = vunpack.c.l.b16 %v290
    %v451 = vpack.c.b16 %v372, %v371
    %v452 = vpack.c.b16 %v374, %v373
    %v453 = vpack.c.b16 %v376, %v375
    %v454 = vpack.c.b16 %v378, %v377
    %v455 = vpack.c.b16 %v380, %v379
    %v456 = vpack.c.b16 %v382, %v381
    %v457 = vpack.c.b16 %v384, %v383
    %v458 = vpack.c.b16 %v386, %v385
    %v459 = vpack.c.b16 %v388, %v387
    %v460 = vpack.c.b16 %v390, %v389
    %v461 = vpack.c.b16 %v392, %v391
    %v462 = vpack.c.b16 %v394, %v393
    %v463 = vpack.c.b16 %v396, %v395
    %v464 = vpack.c.b16 %v398, %v397
    %v465 = vpack.c.b16 %v400, %v399
    %v466 = vpack.c.b16 %v402, %v401
    %v467 = vpack.c.b16 %v404, %v403
    %v468 = vpack.c.b16 %v406, %v405
    %v469 = vpack.c.b16 %v408, %v407
    %v470 = vpack.c.b16 %v410, %v409
    %v471 = vpack.c.b16 %v412, %v411
    %v472 = vpack.c.b16 %v414, %v413
    %v473 = vpack.c.b16 %v416, %v415
    %v474 = vpack.c.b16 %v418, %v417
    %v475 = vpack.c.b16 %v420, %v419
    %v476 = vpack.c.b16 %v422, %v421
    %v477 = vpack.c.b16 %v424, %v423
    %v478 = vpack.c.b16 %v426, %v425
    %v479 = vpack.c.b16 %v428, %v427
    %v480 = vpack.c.b16 %v430, %v429
    %v481 = vpack.c.b16 %v432, %v431
    %v482 = vpack.c.b16 %v434, %v433
    %v483 = vpack.c.b16 %v436, %v435
    %v484 = vpack.c.b16 %v438, %v437
    %v485 = vpack.c.b16 %v440, %v439
    %v486 = vpack.c.b16 %v442, %v441
    %v487 = vpack.c.b16 %v444, %v443
    %v488 = vpack.c.b16 %v446, %v445
    %v489 = vpack.c.b16 %v448, %v447
    %v490 = vpack.c.b16 %v450, %v449
    %531 = vmatprep.subr.bf16.mxu0 0
    %532 = vmatpush1.bf16.msra.mxu0 %v451
    %533 = vmatprep.subr.bf16.mxu0 0
    %534 = vmatpush1.bf16.msra.mxu0 %v452
    %535 = vmatprep.subr.bf16.mxu0 0
    %536 = vmatpush1.bf16.msra.mxu0 %v453
    %537 = vmatprep.subr.bf16.mxu0 0
    %538 = vmatpush1.bf16.msra.mxu0 %v454
    %539 = vmatprep.subr.bf16.mxu0 0
    %540 = vmatpush1.bf16.msra.mxu0 %v455
    %541 = vmatprep.subr.bf16.mxu0 0
    %542 = vmatpush1.bf16.msra.mxu0 %v456
    %543 = vmatprep.subr.bf16.mxu0 0
    %544 = vmatpush1.bf16.msra.mxu0 %v457
    %545 = vmatprep.subr.bf16.mxu0 0
    %546 = vmatpush1.bf16.msra.mxu0 %v458
    %547 = vmatprep.subr.bf16.mxu0 0
    %548 = vmatpush1.bf16.msra.mxu0 %v459
    %549 = vmatprep.subr.bf16.mxu0 0
    %550 = vmatpush1.bf16.msra.mxu0 %v460
    %551 = vmatprep.subr.bf16.mxu0 0
    %552 = vmatpush1.bf16.msra.mxu0 %v461
    %553 = vmatprep.subr.bf16.mxu0 0
    %554 = vmatpush1.bf16.msra.mxu0 %v462
    %555 = vmatprep.subr.bf16.mxu0 0
    %556 = vmatpush1.bf16.msra.mxu0 %v463
    %557 = vmatprep.subr.bf16.mxu0 0
    %558 = vmatpush1.bf16.msra.mxu0 %v464
    %559 = vmatprep.subr.bf16.mxu0 0
    %560 = vmatpush1.bf16.msra.mxu0 %v465
    %561 = vmatprep.subr.bf16.mxu0 0
    %562 = vmatpush1.bf16.msra.mxu0 %v466
    %563 = vmatprep.mubr.bf16.mxu0 %v171
    %564 = vmatmul.mubr.bf16.gmra.mrb[0].mxu0 %v141
    %v565 = vpop.f32.mrb[0].mxu0
    %v566 = vadd.f32 0.0, %v565
    %v567 = vpop.f32.mrb[0].mxu0
    %v568 = vpop.f32.mrb[0].mxu0
    %v569 = vadd.f32 0.0, %v568
    %v570 = vpop.f32.mrb[0].mxu0
    %571 = vmatprep.mubr.bf16.mxu0 %v172
    %572 = vmatmul.mubr.bf16.gmra.mrb[0].mxu0 %v142
    %v573 = vpop.f32.mrb[0].mxu0
    %v574 = vadd.f32 0.0, %v573
    %v575 = vpop.f32.mrb[0].mxu0
    %v576 = vpop.f32.mrb[0].mxu0
    %v577 = vadd.f32 0.0, %v576
    %v578 = vpop.f32.mrb[0].mxu0
    %579 = vmatprep.mubr.bf16.mxu0 %v173
    %580 = vmatmul.mubr.bf16.gmra.mrb[0].mxu0 %v143
    %v581 = vpop.f32.mrb[0].mxu0
    %v582 = vadd.f32 0.0, %v581
    %v583 = vpop.f32.mrb[0].mxu0
    %v584 = vpop.f32.mrb[0].mxu0
    %v585 = vadd.f32 0.0, %v584
    %v586 = vpop.f32.mrb[0].mxu0
    %587 = vmatprep.mubr.bf16.mxu0 %v174
    %588 = vmatmul.mubr.bf16.gmra.mrb[0].mxu0 %v144
    %v589 = vpop.f32.mrb[0].mxu0
    %v590 = vadd.f32 0.0, %v589
    %v591 = vpop.f32.mrb[0].mxu0
    %v592 = vpop.f32.mrb[0].mxu0
    %v593 = vadd.f32 0.0, %v592
    %v594 = vpop.f32.mrb[0].mxu0
    %595 = vmatprep.mubr.bf16.mxu0 %v175
    %596 = vmatmul.mubr.bf16.gmra.mrb[0].mxu0 %v145
    %v597 = vpop.f32.mrb[0].mxu0
    %v598 = vadd.f32 0.0, %v597
    %v599 = vpop.f32.mrb[0].mxu0
    %v600 = vpop.f32.mrb[0].mxu0
    %v601 = vadd.f32 0.0, %v600
    %v602 = vpop.f32.mrb[0].mxu0
    %603 = vmatprep.mubr.bf16.mxu0 %v176
    %604 = vmatmul.mubr.bf16.gmra.mrb[0].mxu0 %v146
    %v605 = vpop.f32.mrb[0].mxu0
    %v606 = vadd.f32 0.0, %v605
    %v607 = vpop.f32.mrb[0].mxu0
    %v608 = vpop.f32.mrb[0].mxu0
    %v609 = vadd.f32 0.0, %v608
    %v610 = vpop.f32.mrb[0].mxu0
    %611 = vmatprep.mubr.bf16.mxu0 %v177
    %612 = vmatmul.mubr.bf16.gmra.mrb[0].mxu0 %v147
    %v613 = vpop.f32.mrb[0].mxu0
    %v614 = vadd.f32 0.0, %v613
    %v615 = vpop.f32.mrb[0].mxu0
    %v616 = vpop.f32.mrb[0].mxu0
    %v617 = vadd.f32 0.0, %v616
    %v618 = vpop.f32.mrb[0].mxu0
    %619 = vmatprep.mubr.bf16.mxu0 %v178
    %620 = vmatmul.mubr.bf16.gmra.mrb[0].mxu0 %v148
    %v621 = vpop.f32.mrb[0].mxu0
    %v622 = vadd.f32 0.0, %v621
    %v623 = vpop.f32.mrb[0].mxu0
    %v624 = vpop.f32.mrb[0].mxu0
    %v625 = vadd.f32 0.0, %v624
    %v626 = vpop.f32.mrb[0].mxu0
    %627 = vmatprep.mubr.bf16.mxu0 %v179
    %628 = vmatmul.mubr.bf16.gmra.mrb[0].mxu0 %v149
    %v629 = vpop.f32.mrb[0].mxu0
    %v630 = vadd.f32 0.0, %v629
    %v631 = vpop.f32.mrb[0].mxu0
    %v632 = vpop.f32.mrb[0].mxu0
    %v633 = vadd.f32 0.0, %v632
    %v634 = vpop.f32.mrb[0].mxu0
    %635 = vmatprep.mubr.bf16.mxu0 %v180
    %636 = vmatmul.mubr.bf16.gmra.mrb[0].mxu0 %v150
    %v637 = vpop.f32.mrb[0].mxu0
    %v638 = vadd.f32 0.0, %v637
    %v639 = vpop.f32.mrb[0].mxu0
    %v640 = vpop.f32.mrb[0].mxu0
    %v641 = vadd.f32 0.0, %v640
    %v642 = vpop.f32.mrb[0].mxu0
    %643 = vmatprep.mubr.bf16.mxu0 %v181
    %644 = vmatmul.mubr.bf16.gmra.mrb[0].mxu0 %v151
    %v645 = vpop.f32.mrb[0].mxu0
    %v646 = vadd.f32 0.0, %v645
    %v647 = vpop.f32.mrb[0].mxu0
    %v648 = vpop.f32.mrb[0].mxu0
    %v649 = vadd.f32 0.0, %v648
    %v650 = vpop.f32.mrb[0].mxu0
    %651 = vmatprep.mubr.bf16.mxu0 %v182
    %652 = vmatmul.mubr.bf16.gmra.mrb[0].mxu0 %v152
    %v653 = vpop.f32.mrb[0].mxu0
    %v654 = vadd.f32 0.0, %v653
    %v655 = vpop.f32.mrb[0].mxu0
    %v656 = vpop.f32.mrb[0].mxu0
    %v657 = vadd.f32 0.0, %v656
    %v658 = vpop.f32.mrb[0].mxu0
    %659 = vmatprep.mubr.bf16.mxu0 %v183
    %660 = vmatmul.mubr.bf16.gmra.mrb[0].mxu0 %v153
    %v661 = vpop.f32.mrb[0].mxu0
    %v662 = vadd.f32 0.0, %v661
    %v663 = vpop.f32.mrb[0].mxu0
    %v664 = vpop.f32.mrb[0].mxu0
    %v665 = vadd.f32 0.0, %v664
    %v666 = vpop.f32.mrb[0].mxu0
    %667 = vmatprep.mubr.bf16.mxu0 %v184
    %668 = vmatmul.mubr.bf16.gmra.mrb[0].mxu0 %v154
    %v669 = vpop.f32.mrb[0].mxu0
    %v670 = vadd.f32 0.0, %v669
    %v671 = vpop.f32.mrb[0].mxu0
    %v672 = vpop.f32.mrb[0].mxu0
    %v673 = vadd.f32 0.0, %v672
    %v674 = vpop.f32.mrb[0].mxu0
    %675 = vdwg.mxu0
    %676 = vmatprep.subr.bf16.mxu0 0
    %677 = vmatpush1.bf16.msra.mxu0 %v467
    %678 = vmatprep.subr.bf16.mxu0 0
    %679 = vmatpush1.bf16.msra.mxu0 %v468
    %680 = vmatprep.subr.bf16.mxu0 0
    %681 = vmatpush1.bf16.msra.mxu0 %v469
    %682 = vmatprep.subr.bf16.mxu0 0
    %683 = vmatpush1.bf16.msra.mxu0 %v470
    %684 = vmatprep.subr.bf16.mxu0 0
    %685 = vmatpush1.bf16.msra.mxu0 %v471
    %686 = vmatprep.subr.bf16.mxu0 0
    %687 = vmatpush1.bf16.msra.mxu0 %v472
    %688 = vmatprep.subr.bf16.mxu0 0
    %689 = vmatpush1.bf16.msra.mxu0 %v473
    %690 = vmatprep.subr.bf16.mxu0 0
    %691 = vmatpush1.bf16.msra.mxu0 %v474
    %692 = vmatprep.subr.bf16.mxu0 0
    %693 = vmatpush1.bf16.msra.mxu0 %v475
    %694 = vmatprep.subr.bf16.mxu0 0
    %695 = vmatpush1.bf16.msra.mxu0 %v476
    %696 = vmatprep.subr.bf16.mxu0 0
    %697 = vmatpush1.bf16.msra.mxu0 %v477
    %698 = vmatprep.subr.bf16.mxu0 0
    %699 = vmatpush1.bf16.msra.mxu0 %v478
    %700 = vmatprep.subr.bf16.mxu0 0
    %701 = vmatpush1.bf16.msra.mxu0 %v479
    %702 = vmatprep.subr.bf16.mxu0 0
    %703 = vmatpush1.bf16.msra.mxu0 %v480
    %704 = vmatprep.subr.bf16.mxu0 0
    %705 = vmatpush1.bf16.msra.mxu0 %v481
    %706 = vmatprep.subr.bf16.mxu0 0
    %707 = vmatpush1.bf16.msra.mxu0 %v482
    %708 = vmatprep.mubr.bf16.mxu0 %v172
    %709 = vmatmul.mubr.bf16.gmra.mrb[0].mxu0 %v142
    %v710 = vpop.f32.mrb[0].mxu0
    %v711 = vadd.f32 %v566, %v710
    %v712 = vpop.f32.mrb[0].mxu0
    %v713 = vpop.f32.mrb[0].mxu0
    %v714 = vadd.f32 %v569, %v713
    %v715 = vpop.f32.mrb[0].mxu0
    %716 = vmatprep.mubr.bf16.mxu0 %v173
    %717 = vmatmul.mubr.bf16.gmra.mrb[0].mxu0 %v143
    %v718 = vpop.f32.mrb[0].mxu0
    %v719 = vadd.f32 %v574, %v718
    %v720 = vpop.f32.mrb[0].mxu0
    %v721 = vpop.f32.mrb[0].mxu0
    %v722 = vadd.f32 %v577, %v721
    %v723 = vpop.f32.mrb[0].mxu0
    %724 = vmatprep.mubr.bf16.mxu0 %v174
    %725 = vmatmul.mubr.bf16.gmra.mrb[0].mxu0 %v144
    %v726 = vpop.f32.mrb[0].mxu0
    %v727 = vadd.f32 %v582, %v726
    %v728 = vpop.f32.mrb[0].mxu0
    %v729 = vpop.f32.mrb[0].mxu0
    %v730 = vadd.f32 %v585, %v729
    %v731 = vpop.f32.mrb[0].mxu0
    %732 = vmatprep.mubr.bf16.mxu0 %v175
    %733 = vmatmul.mubr.bf16.gmra.mrb[0].mxu0 %v145
    %v734 = vpop.f32.mrb[0].mxu0
    %v735 = vadd.f32 %v590, %v734
    %v736 = vpop.f32.mrb[0].mxu0
    %v737 = vpop.f32.mrb[0].mxu0
    %v738 = vadd.f32 %v593, %v737
    %v739 = vpop.f32.mrb[0].mxu0
    %740 = vmatprep.mubr.bf16.mxu0 %v176
    %741 = vmatmul.mubr.bf16.gmra.mrb[0].mxu0 %v146
    %v742 = vpop.f32.mrb[0].mxu0
    %v743 = vadd.f32 %v598, %v742
    %v744 = vpop.f32.mrb[0].mxu0
    %v745 = vpop.f32.mrb[0].mxu0
    %v746 = vadd.f32 %v601, %v745
    %v747 = vpop.f32.mrb[0].mxu0
    %748 = vmatprep.mubr.bf16.mxu0 %v177
    %749 = vmatmul.mubr.bf16.gmra.mrb[0].mxu0 %v147
    %v750 = vpop.f32.mrb[0].mxu0
    %v751 = vadd.f32 %v606, %v750
    %v752 = vpop.f32.mrb[0].mxu0
    %v753 = vpop.f32.mrb[0].mxu0
    %v754 = vadd.f32 %v609, %v753
    %v755 = vpop.f32.mrb[0].mxu0
    %756 = vmatprep.mubr.bf16.mxu0 %v178
    %757 = vmatmul.mubr.bf16.gmra.mrb[0].mxu0 %v148
    %v758 = vpop.f32.mrb[0].mxu0
    %v759 = vadd.f32 %v614, %v758
    %v760 = vpop.f32.mrb[0].mxu0
    %v761 = vpop.f32.mrb[0].mxu0
    %v762 = vadd.f32 %v617, %v761
    %v763 = vpop.f32.mrb[0].mxu0
    %764 = vmatprep.mubr.bf16.mxu0 %v179
    %765 = vmatmul.mubr.bf16.gmra.mrb[0].mxu0 %v149
    %v766 = vpop.f32.mrb[0].mxu0
    %v767 = vadd.f32 %v622, %v766
    %v768 = vpop.f32.mrb[0].mxu0
    %v769 = vpop.f32.mrb[0].mxu0
    %v770 = vadd.f32 %v625, %v769
    %v771 = vpop.f32.mrb[0].mxu0
    %772 = vmatprep.mubr.bf16.mxu0 %v180
    %773 = vmatmul.mubr.bf16.gmra.mrb[0].mxu0 %v150
    %v774 = vpop.f32.mrb[0].mxu0
    %v775 = vadd.f32 %v630, %v774
    %v776 = vpop.f32.mrb[0].mxu0
    %v777 = vpop.f32.mrb[0].mxu0
    %v778 = vadd.f32 %v633, %v777
    %v779 = vpop.f32.mrb[0].mxu0
    %780 = vmatprep.mubr.bf16.mxu0 %v181
    %781 = vmatmul.mubr.bf16.gmra.mrb[0].mxu0 %v151
    %v782 = vpop.f32.mrb[0].mxu0
    %v783 = vadd.f32 %v638, %v782
    %v784 = vpop.f32.mrb[0].mxu0
    %v785 = vpop.f32.mrb[0].mxu0
    %v786 = vadd.f32 %v641, %v785
    %v787 = vpop.f32.mrb[0].mxu0
    %788 = vmatprep.mubr.bf16.mxu0 %v182
    %789 = vmatmul.mubr.bf16.gmra.mrb[0].mxu0 %v152
    %v790 = vpop.f32.mrb[0].mxu0
    %v791 = vadd.f32 %v646, %v790
    %v792 = vpop.f32.mrb[0].mxu0
    %v793 = vpop.f32.mrb[0].mxu0
    %v794 = vadd.f32 %v649, %v793
    %v795 = vpop.f32.mrb[0].mxu0
    %796 = vmatprep.mubr.bf16.mxu0 %v183
    %797 = vmatmul.mubr.bf16.gmra.mrb[0].mxu0 %v153
    %v798 = vpop.f32.mrb[0].mxu0
    %v799 = vadd.f32 %v654, %v798
    %v800 = vpop.f32.mrb[0].mxu0
    %v801 = vpop.f32.mrb[0].mxu0
    %v802 = vadd.f32 %v657, %v801
    %v803 = vpop.f32.mrb[0].mxu0
    %804 = vmatprep.mubr.bf16.mxu0 %v184
    %805 = vmatmul.mubr.bf16.gmra.mrb[0].mxu0 %v154
    %v806 = vpop.f32.mrb[0].mxu0
    %v807 = vadd.f32 %v662, %v806
    %v808 = vpop.f32.mrb[0].mxu0
    %v809 = vpop.f32.mrb[0].mxu0
    %v810 = vadd.f32 %v665, %v809
    %v811 = vpop.f32.mrb[0].mxu0
    %812 = vmatprep.mubr.bf16.mxu0 %v205
    %813 = vmatmul.mubr.bf16.gmra.mrb[0].mxu0 %v201
    %v814 = vpop.f32.mrb[0].mxu0
    %v815 = vadd.f32 %v670, %v814
    %v816 = vpop.f32.mrb[0].mxu0
    %v817 = vpop.f32.mrb[0].mxu0
    %v818 = vadd.f32 %v673, %v817
    %v819 = vpop.f32.mrb[0].mxu0
    %820 = vdwg.mxu0
    %821 = vmatprep.subr.bf16.mxu0 0
    %822 = vmatpush1.bf16.msra.mxu0 %v483
    %823 = vmatprep.subr.bf16.mxu0 0
    %824 = vmatpush1.bf16.msra.mxu0 %v484
    %825 = vmatprep.subr.bf16.mxu0 0
    %826 = vmatpush1.bf16.msra.mxu0 %v485
    %827 = vmatprep.subr.bf16.mxu0 0
    %828 = vmatpush1.bf16.msra.mxu0 %v486
    %829 = vmatprep.subr.bf16.mxu0 0
    %830 = vmatpush1.bf16.msra.mxu0 %v487
    %831 = vmatprep.subr.bf16.mxu0 0
    %832 = vmatpush1.bf16.msra.mxu0 %v488
    %833 = vmatprep.subr.bf16.mxu0 0
    %834 = vmatpush1.bf16.msra.mxu0 %v489
    %835 = vmatprep.subr.bf16.mxu0 0
    %836 = vmatpush1.bf16.msra.mxu0 %v490
    %837 = vmatprep.subr.bf16.mxu0 0
    %838 = vmatpush1.bf16.msra.mxu0 0
    %839 = vmatprep.subr.bf16.mxu0 0
    %840 = vmatpush1.bf16.msra.mxu0 0
    %841 = vmatprep.subr.bf16.mxu0 0
    %842 = vmatpush1.bf16.msra.mxu0 0
    %843 = vmatprep.subr.bf16.mxu0 0
    %844 = vmatpush1.bf16.msra.mxu0 0
    %845 = vmatprep.subr.bf16.mxu0 0
    %846 = vmatpush1.bf16.msra.mxu0 0
    %847 = vmatprep.subr.bf16.mxu0 0
    %848 = vmatpush1.bf16.msra.mxu0 0
    %849 = vmatprep.subr.bf16.mxu0 0
    %850 = vmatpush1.bf16.msra.mxu0 0
    %851 = vmatprep.subr.bf16.mxu0 0
    %852 = vmatpush1.bf16.msra.mxu0 0
    %853 = vmatprep.mubr.bf16.mxu0 0
    %854 = vmatmul.mubr.bf16.gmra.mrb[0].mxu0 %v143
    %v855 = vpop.f32.mrb[0].mxu0
    %v856 = vadd.f32 %v711, %v855
    %v857 = vpop.f32.mrb[0].mxu0
    %v858 = vpop.f32.mrb[0].mxu0
    %v859 = vadd.f32 %v714, %v858
    %v860 = vpop.f32.mrb[0].mxu0
    %861 = vmatprep.mubr.bf16.mxu0 0
    %862 = vmatmul.mubr.bf16.gmra.mrb[0].mxu0 %v144
    %v863 = vpop.f32.mrb[0].mxu0
    %v864 = vadd.f32 %v719, %v863
    %v865 = vpop.f32.mrb[0].mxu0
    %v866 = vpop.f32.mrb[0].mxu0
    %v867 = vadd.f32 %v722, %v866
    %v868 = vpop.f32.mrb[0].mxu0
    %869 = vmatprep.mubr.bf16.mxu0 0
    %870 = vmatmul.mubr.bf16.gmra.mrb[0].mxu0 %v145
    %v871 = vpop.f32.mrb[0].mxu0
    %v872 = vadd.f32 %v727, %v871
    %v873 = vpop.f32.mrb[0].mxu0
    %v874 = vpop.f32.mrb[0].mxu0
    %v875 = vadd.f32 %v730, %v874
    %v876 = vpop.f32.mrb[0].mxu0
    %877 = vmatprep.mubr.bf16.mxu0 0
    %878 = vmatmul.mubr.bf16.gmra.mrb[0].mxu0 %v146
    %v879 = vpop.f32.mrb[0].mxu0
    %v880 = vadd.f32 %v735, %v879
    %v881 = vpop.f32.mrb[0].mxu0
    %v882 = vpop.f32.mrb[0].mxu0
    %v883 = vadd.f32 %v738, %v882
    %v884 = vpop.f32.mrb[0].mxu0
    %885 = vmatprep.mubr.bf16.mxu0 0
    %886 = vmatmul.mubr.bf16.gmra.mrb[0].mxu0 %v147
    %v887 = vpop.f32.mrb[0].mxu0
    %v888 = vadd.f32 %v743, %v887
    %v889 = vpop.f32.mrb[0].mxu0
    %v890 = vpop.f32.mrb[0].mxu0
    %v891 = vadd.f32 %v746, %v890
    %v892 = vpop.f32.mrb[0].mxu0
    %893 = vmatprep.mubr.bf16.mxu0 0
    %894 = vmatmul.mubr.bf16.gmra.mrb[0].mxu0 %v148
    %v895 = vpop.f32.mrb[0].mxu0
    %v896 = vadd.f32 %v751, %v895
    %v897 = vpop.f32.mrb[0].mxu0
    %v898 = vpop.f32.mrb[0].mxu0
    %v899 = vadd.f32 %v754, %v898
    %v900 = vpop.f32.mrb[0].mxu0
    %901 = vmatprep.mubr.bf16.mxu0 0
    %902 = vmatmul.mubr.bf16.gmra.mrb[0].mxu0 %v149
    %v903 = vpop.f32.mrb[0].mxu0
    %v904 = vadd.f32 %v759, %v903
    %v905 = vpop.f32.mrb[0].mxu0
    %v906 = vpop.f32.mrb[0].mxu0
    %v907 = vadd.f32 %v762, %v906
    %v908 = vpop.f32.mrb[0].mxu0
    %909 = vmatprep.mubr.bf16.mxu0 0
    %910 = vmatmul.mubr.bf16.gmra.mrb[0].mxu0 %v150
    %v911 = vpop.f32.mrb[0].mxu0
    %v912 = vadd.f32 %v767, %v911
    %v913 = vpop.f32.mrb[0].mxu0
    %v914 = vpop.f32.mrb[0].mxu0
    %v915 = vadd.f32 %v770, %v914
    %v916 = vpop.f32.mrb[0].mxu0
    %917 = vmatprep.mubr.bf16.mxu0 0
    %918 = vmatmul.mubr.bf16.gmra.mrb[0].mxu0 %v151
    %v919 = vpop.f32.mrb[0].mxu0
    %v920 = vadd.f32 %v775, %v919
    %v921 = vpop.f32.mrb[0].mxu0
    %v922 = vpop.f32.mrb[0].mxu0
    %v923 = vadd.f32 %v778, %v922
    %v924 = vpop.f32.mrb[0].mxu0
    %925 = vmatprep.mubr.bf16.mxu0 0
    %926 = vmatmul.mubr.bf16.gmra.mrb[0].mxu0 %v152
    %v927 = vpop.f32.mrb[0].mxu0
    %v928 = vadd.f32 %v783, %v927
    %v929 = vpop.f32.mrb[0].mxu0
    %v930 = vpop.f32.mrb[0].mxu0
    %v931 = vadd.f32 %v786, %v930
    %v932 = vpop.f32.mrb[0].mxu0
    %933 = vmatprep.mubr.bf16.mxu0 0
    %934 = vmatmul.mubr.bf16.gmra.mrb[0].mxu0 %v153
    %v935 = vpop.f32.mrb[0].mxu0
    %v936 = vadd.f32 %v791, %v935
    %v937 = vpop.f32.mrb[0].mxu0
    %v938 = vpop.f32.mrb[0].mxu0
    %v939 = vadd.f32 %v794, %v938
    %v940 = vpop.f32.mrb[0].mxu0
    %941 = vmatprep.mubr.bf16.mxu0 0
    %942 = vmatmul.mubr.bf16.gmra.mrb[0].mxu0 %v154
    %v943 = vpop.f32.mrb[0].mxu0
    %v944 = vadd.f32 %v799, %v943
    %v945 = vpop.f32.mrb[0].mxu0
    %v946 = vpop.f32.mrb[0].mxu0
    %v947 = vadd.f32 %v802, %v946
    %v948 = vpop.f32.mrb[0].mxu0
    %949 = vmatprep.mubr.bf16.mxu0 0
    %950 = vmatmul.mubr.bf16.gmra.mrb[0].mxu0 %v201
    %v951 = vpop.f32.mrb[0].mxu0
    %v952 = vadd.f32 %v807, %v951
    %v953 = vpop.f32.mrb[0].mxu0
    %v954 = vpop.f32.mrb[0].mxu0
    %v955 = vadd.f32 %v810, %v954
    %v956 = vpop.f32.mrb[0].mxu0
    %957 = vmatprep.mubr.bf16.mxu0 0
    %958 = vmatmul.mubr.bf16.gmra.mrb[0].mxu0 %v209
    %v959 = vpop.f32.mrb[0].mxu0
    %v960 = vadd.f32 %v815, %v959
    %v961 = vpop.f32.mrb[0].mxu0
    %v962 = vpop.f32.mrb[0].mxu0
    %v963 = vadd.f32 %v818, %v962
    %v964 = vpop.f32.mrb[0].mxu0
    %965 = vdwg.mxu0
    %v966 = vld [vmem:[%s2] sm:$0x1]
    %v968 = vlaneseq
    %v969 = vshrl.u32 %v968, 7
    %v970 = vsub.s32 0, %v969
    %v971 = vrot.slane %v966, %v970
    %v973 = vmul.f32 %v856, %v971
    %v974 = vmul.f32 %v859, %v971
    %v975 = vmul.f32 %v864, %v971
    %v976 = vmul.f32 %v867, %v971
    %v977 = vmul.f32 %v872, %v971
    %v978 = vmul.f32 %v875, %v971
    %v979 = vmul.f32 %v880, %v971
    %v980 = vmul.f32 %v883, %v971
    %v981 = vmul.f32 %v888, %v971
    %v982 = vmul.f32 %v891, %v971
    %v983 = vmul.f32 %v896, %v971
    %v984 = vmul.f32 %v899, %v971
    %v985 = vmul.f32 %v904, %v971
    %v986 = vmul.f32 %v907, %v971
    %v987 = vmul.f32 %v912, %v971
    %v988 = vmul.f32 %v915, %v971
    %v989 = vmul.f32 %v920, %v971
    %v990 = vmul.f32 %v923, %v971
    %v991 = vmul.f32 %v928, %v971
    %v992 = vmul.f32 %v931, %v971
    %v993 = vmul.f32 %v936, %v971
    %v994 = vmul.f32 %v939, %v971
    %v995 = vmul.f32 %v944, %v971
    %v996 = vmul.f32 %v947, %v971
    %v997 = vmul.f32 %v952, %v971
    %v998 = vmul.f32 %v955, %v971
    %v999 = vmul.f32 %v960, %v971
    %v1000 = vmul.f32 %v963, %v971
    %v1001 = vld [vmem:[%s3] sm:$0x1]
    %v1003 = vlaneseq
    %v1004 = vshrl.u32 %v1003, 7
    %v1005 = vsub.s32 0, %v1004
    %v1006 = vrot.slane %v1001, %v1005
    %v1008 = vadd.f32 %v973, %v1006
    %v1009 = vadd.f32 %v974, %v1006
    %v1010 = vadd.f32 %v975, %v1006
    %v1011 = vadd.f32 %v976, %v1006
    %v1012 = vadd.f32 %v977, %v1006
    %v1013 = vadd.f32 %v978, %v1006
    %v1014 = vadd.f32 %v979, %v1006
    %v1015 = vadd.f32 %v980, %v1006
    %v1016 = vadd.f32 %v981, %v1006
    %v1017 = vadd.f32 %v982, %v1006
    %v1018 = vadd.f32 %v983, %v1006
    %v1019 = vadd.f32 %v984, %v1006
    %v1020 = vadd.f32 %v985, %v1006
    %v1021 = vadd.f32 %v986, %v1006
    %v1022 = vadd.f32 %v987, %v1006
    %v1023 = vadd.f32 %v988, %v1006
    %v1024 = vadd.f32 %v989, %v1006
    %v1025 = vadd.f32 %v990, %v1006
    %v1026 = vadd.f32 %v991, %v1006
    %v1027 = vadd.f32 %v992, %v1006
    %v1028 = vadd.f32 %v993, %v1006
    %v1029 = vadd.f32 %v994, %v1006
    %v1030 = vadd.f32 %v995, %v1006
    %v1031 = vadd.f32 %v996, %v1006
    %v1032 = vadd.f32 %v997, %v1006
    %v1033 = vadd.f32 %v998, %v1006
    %v1034 = vadd.f32 %v999, %v1006
    %v1035 = vadd.f32 %v1000, %v1006
    %v1036 = vmax.f32 %v1008, 0.0
    %v1037 = vmax.f32 %v1009, 0.0
    %v1038 = vmax.f32 %v1010, 0.0
    %v1039 = vmax.f32 %v1011, 0.0
    %v1040 = vmax.f32 %v1012, 0.0
    %v1041 = vmax.f32 %v1013, 0.0
    %v1042 = vmax.f32 %v1014, 0.0
    %v1043 = vmax.f32 %v1015, 0.0
    %v1044 = vmax.f32 %v1016, 0.0
    %v1045 = vmax.f32 %v1017, 0.0
    %v1046 = vmax.f32 %v1018, 0.0
    %v1047 = vmax.f32 %v1019, 0.0
    %v1048 = vmax.f32 %v1020, 0.0
    %v1049 = vmax.f32 %v1021, 0.0
    %v1050 = vmax.f32 %v1022, 0.0
    %v1051 = vmax.f32 %v1023, 0.0
    %v1052 = vmax.f32 %v1024, 0.0
    %v1053 = vmax.f32 %v1025, 0.0
    %v1054 = vmax.f32 %v1026, 0.0
    %v1055 = vmax.f32 %v1027, 0.0
    %v1056 = vmax.f32 %v1028, 0.0
    %v1057 = vmax.f32 %v1029, 0.0
    %v1058 = vmax.f32 %v1030, 0.0
    %v1059 = vmax.f32 %v1031, 0.0
    %v1060 = vmax.f32 %v1032, 0.0
    %v1061 = vmax.f32 %v1033, 0.0
    %v1062 = vmax.f32 %v1034, 0.0
    %v1063 = vmax.f32 %v1035, 0.0
    %v1064 = vmax.f32 %v1036, %v1037
    %v1065 = vmax.f32 %v1038, %v1039
    %v1066 = vmax.f32 %v1040, %v1041
    %v1067 = vmax.f32 %v1042, %v1043
    %v1068 = vmax.f32 %v1044, %v1045
    %v1069 = vmax.f32 %v1046, %v1047
    %v1070 = vmax.f32 %v1048, %v1049
    %v1071 = vmax.f32 %v1050, %v1051
    %v1072 = vmax.f32 %v1052, %v1053
    %v1073 = vmax.f32 %v1054, %v1055
    %v1074 = vmax.f32 %v1056, %v1057
    %v1075 = vmax.f32 %v1058, %v1059
    %v1076 = vmax.f32 %v1060, %v1061
    %v1077 = vmax.f32 %v1062, %v1063
    %1092 = vrot.lane.b32.xlu0 %v1064, 127
    %v1093 = vpop.permute.xlu0 %1092
    %1094 = vrot.lane.b32.xlu0 %v1065, 127
    %v1095 = vpop.permute.xlu0 %1094
    %1096 = vrot.lane.b32.xlu0 %v1066, 127
    %v1097 = vpop.permute.xlu0 %1096
    %1098 = vrot.lane.b32.xlu0 %v1067, 127
    %v1099 = vpop.permute.xlu0 %1098
    %1100 = vrot.lane.b32.xlu0 %v1068, 127
    %v1101 = vpop.permute.xlu0 %1100
    %1102 = vrot.lane.b32.xlu0 %v1069, 127
    %v1103 = vpop.permute.xlu0 %1102
    %1104 = vrot.lane.b32.xlu0 %v1070, 127
    %v1105 = vpop.permute.xlu0 %1104
    %1106 = vrot.lane.b32.xlu0 %v1071, 127
    %v1107 = vpop.permute.xlu0 %1106
    %1108 = vrot.lane.b32.xlu0 %v1072, 127
    %v1109 = vpop.permute.xlu0 %1108
    %1110 = vrot.lane.b32.xlu0 %v1073, 127
    %v1111 = vpop.permute.xlu0 %1110
    %1112 = vrot.lane.b32.xlu0 %v1074, 127
    %v1113 = vpop.permute.xlu0 %1112
    %1114 = vrot.lane.b32.xlu0 %v1075, 127
    %v1115 = vpop.permute.xlu0 %1114
    %1116 = vrot.lane.b32.xlu0 %v1076, 127
    %v1117 = vpop.permute.xlu0 %1116
    %1118 = vrot.lane.b32.xlu0 %v1077, 127
    %v1119 = vpop.permute.xlu0 %1118
    %v1134 = vmax.f32 %v1064, %v1093
    %v1135 = vmax.f32 %v1065, %v1095
    %v1136 = vmax.f32 %v1066, %v1097
    %v1137 = vmax.f32 %v1067, %v1099
    %v1138 = vmax.f32 %v1068, %v1101
    %v1139 = vmax.f32 %v1069, %v1103
    %v1140 = vmax.f32 %v1070, %v1105
    %v1141 = vmax.f32 %v1071, %v1107
    %v1142 = vmax.f32 %v1072, %v1109
    %v1143 = vmax.f32 %v1073, %v1111
    %v1144 = vmax.f32 %v1074, %v1113
    %v1145 = vmax.f32 %v1075, %v1115
    %v1146 = vmax.f32 %v1076, %v1117
    %v1147 = vmax.f32 %v1077, %v1119
    %v1148 = vpack.c.bf16 %v1134, %v1134
    %v1149 = vpack.c.bf16 %v1135, %v1135
    %v1150 = vpack.c.bf16 %v1136, %v1136
    %v1151 = vpack.c.bf16 %v1137, %v1137
    %v1152 = vpack.c.bf16 %v1138, %v1138
    %v1153 = vpack.c.bf16 %v1139, %v1139
    %v1154 = vpack.c.bf16 %v1140, %v1140
    %v1155 = vpack.c.bf16 %v1141, %v1141
    %v1156 = vpack.c.bf16 %v1142, %v1142
    %v1157 = vpack.c.bf16 %v1143, %v1143
    %v1158 = vpack.c.bf16 %v1144, %v1144
    %v1159 = vpack.c.bf16 %v1145, %v1145
    %v1160 = vpack.c.bf16 %v1146, %v1146
    %v1161 = vpack.c.bf16 %v1147, %v1147
    %v1172 = vunpack.c.l.b16 %v1148
    %v1173 = vunpack.c.l.b16 %v1149
    %v1174 = vunpack.c.l.b16 %v1150
    %v1175 = vunpack.c.l.b16 %v1151
    %v1176 = vunpack.c.l.b16 %v1152
    %v1177 = vunpack.c.l.b16 %v1153
    %v1178 = vunpack.c.l.b16 %v1154
    %v1179 = vunpack.c.l.b16 %v1155
    %v1180 = vunpack.c.l.b16 %v1156
    %v1181 = vunpack.c.l.b16 %v1157
    %v1182 = vpack.c.b16 %v1173, %v1172
    %v1183 = vpack.c.b16 %v1175, %v1174
    %v1184 = vpack.c.b16 %v1177, %v1176
    %v1185 = vpack.c.b16 %v1179, %v1178
    %v1186 = vpack.c.b16 %v1181, %v1180
    %v1193 = vunpack.c.l.b16 %v1158
    %v1194 = vpack.c.b16 %v1174, %v1173
    %v1195 = vpack.c.b16 %v1176, %v1175
    %v1196 = vpack.c.b16 %v1178, %v1177
    %v1197 = vpack.c.b16 %v1180, %v1179
    %v1198 = vpack.c.b16 %v1193, %v1181
    %v1205 = vunpack.c.l.b16 %v1159
    %v1206 = vpack.c.b16 %v1205, %v1193
    %v1209 = vunpack.c.l.b16 %v1160
    %v1210 = vpack.c.b16 %v1209, %v1205
    %v1213 = vunpack.c.l.b16 %v1161
    %v1214 = vpack.c.b16 %v1213, %v1209
    %v1216 = vld [vmem:[%s4] sm:$0xf]
    %v1217 = vld [vmem:[%s4 + $0x4] sm:$0xf]
    %v1218 = vld [vmem:[%s4 + $0x8] sm:$0xf]
    %v1219 = vld [vmem:[%s4 + $0xc] sm:$0xf]
    %v1220 = vld [vmem:[%s4 + $0x10] sm:$0xf]
    %v1221 = vld [vmem:[%s4 + $0x14] sm:$0xf]
    %v1222 = vld [vmem:[%s4 + $0x18] sm:$0xf]
    %v1223 = vld [vmem:[%s4 + $0x1c] sm:$0xf]
    %v1224 = vld [vmem:[%s4 + $0x20] sm:$0xf]
    %v1225 = vld [vmem:[%s4 + $0x24] sm:$0xf]
    %v1226 = vld [vmem:[%s4 + $0x28] sm:$0xf]
    %v1227 = vld [vmem:[%s4 + $0x2c] sm:$0xf]
    %v1228 = vld [vmem:[%s4 + $0x30] sm:$0xf]
    %v1229 = vld [vmem:[%s4 + $0x34] sm:$0xf]
    %v1230 = vld [vmem:[%s4 + $0x38] sm:$0xf]
    %v1231 = vld [vmem:[%s4 + $0x3c] sm:$0xf]
    %v1232 = vld [vmem:[%s4 + $0x40] sm:$0xf]
    %v1233 = vld [vmem:[%s4 + $0x44] sm:$0xf]
    %v1234 = vld [vmem:[%s4 + $0x48] sm:$0xf]
    %v1235 = vld [vmem:[%s4 + $0x4c] sm:$0xf]
    %v1236 = vld [vmem:[%s4 + $0x50] sm:$0xf]
    %v1237 = vld [vmem:[%s4 + $0x54] sm:$0xf]
    %v1238 = vld [vmem:[%s4 + $0x58] sm:$0xf]
    %v1239 = vld [vmem:[%s4 + $0x5c] sm:$0xf]
    %v1240 = vld [vmem:[%s4 + $0x60] sm:$0xf]
    %v1241 = vld [vmem:[%s4 + $0x64] sm:$0xf]
    %v1242 = vld [vmem:[%s4 + $0x68] sm:$0xf]
    %v1243 = vld [vmem:[%s4 + $0x6c] sm:$0xf]
    %v1244 = vld [vmem:[%s4 + $0x70] sm:$0xf]
    %v1245 = vld [vmem:[%s4 + $0x74] sm:$0xf]
    %v1246 = vld [vmem:[%s4 + $0x78] sm:$0xf]
    %v1247 = vld [vmem:[%s4 + $0x7c] sm:$0xf]
    %v1248 = vld [vmem:[%s4 + $0x80] sm:$0xf]
    %v1249 = vld [vmem:[%s4 + $0x84] sm:$0xf]
    %v1250 = vld [vmem:[%s4 + $0x88] sm:$0xf]
    %v1251 = vld [vmem:[%s4 + $0x8c] sm:$0xf]
    %v1252 = vld [vmem:[%s4 + $0x90] sm:$0xf]
    %v1253 = vld [vmem:[%s4 + $0x94] sm:$0xf]
    %v1254 = vld [vmem:[%s4 + $0x98] sm:$0xf]
    %v1255 = vld [vmem:[%s4 + $0x9c] sm:$0xf]
    %v1256 = vld [vmem:[%s4 + $0xa0] sm:$0xf]
    %v1257 = vld [vmem:[%s4 + $0xa4] sm:$0xf]
    %v1258 = vld [vmem:[%s4 + $0xa8] sm:$0xf]
    %v1259 = vld [vmem:[%s4 + $0xac] sm:$0xf]
    %v1260 = vld [vmem:[%s4 + $0xb0] sm:$0xf]
    %v1261 = vld [vmem:[%s4 + $0xb4] sm:$0xf]
    %v1262 = vld [vmem:[%s4 + $0xb8] sm:$0xf]
    %v1263 = vld [vmem:[%s4 + $0xbc] sm:$0xf]
    %v1264 = vld [vmem:[%s4 + $0xc0] sm:$0xf]
    %v1265 = vld [vmem:[%s4 + $0xc4] sm:$0xf]
    %v1266 = vld [vmem:[%s4 + $0xc8] sm:$0xf]
    %v1267 = vld [vmem:[%s4 + $0xcc] sm:$0xf]
    %v1268 = vld [vmem:[%s4 + $0xd0] sm:$0xf]
    %v1269 = vld [vmem:[%s4 + $0xd4] sm:$0xf]
    %v1270 = vld [vmem:[%s4 + $0xd8] sm:$0xf]
    %v1271 = vld [vmem:[%s4 + $0xdc] sm:$0xf]
    %v1272 = vld [vmem:[%s4 + $0xe0] sm:$0xf]
    %v1273 = vld [vmem:[%s4 + $0xe4] sm:$0xf]
    %v1274 = vld [vmem:[%s4 + $0xe8] sm:$0xf]
    %v1275 = vld [vmem:[%s4 + $0xec] sm:$0xf]
    %v1276 = vld [vmem:[%s4 + $0xf0] sm:$0xf]
    %v1277 = vld [vmem:[%s4 + $0xf4] sm:$0xf]
    %v1278 = vld [vmem:[%s4 + $0xf8] sm:$0xf]
    %v1279 = vld [vmem:[%s4 + $0xfc] sm:$0xf]
    %v1280 = vld [vmem:[%s4 + $0x100] sm:$0xf]
    %v1281 = vld [vmem:[%s4 + $0x104] sm:$0xf]
    %v1282 = vld [vmem:[%s4 + $0x108] sm:$0xf]
    %v1283 = vld [vmem:[%s4 + $0x10c] sm:$0xf]
    %v1284 = vld [vmem:[%s4 + $0x110] sm:$0xf]
    %v1285 = vld [vmem:[%s4 + $0x114] sm:$0xf]
    %v1286 = vld [vmem:[%s4 + $0x118] sm:$0xf]
    %v1287 = vld [vmem:[%s4 + $0x11c] sm:$0xf]
    %v1288 = vld [vmem:[%s4 + $0x120] sm:$0xf]
    %v1289 = vld [vmem:[%s4 + $0x124] sm:$0xf]
    %v1290 = vld [vmem:[%s4 + $0x128] sm:$0xf]
    %v1291 = vld [vmem:[%s4 + $0x12c] sm:$0xf]
    %v1292 = vld [vmem:[%s4 + $0x130] sm:$0xf]
    %v1293 = vld [vmem:[%s4 + $0x134] sm:$0xf]
    %v1294 = vld [vmem:[%s4 + $0x138] sm:$0xf]
    %v1295 = vld [vmem:[%s4 + $0x13c] sm:$0xf]
    %v1376 = vunpack.c.l.b16 %v1216
    %v1377 = vunpack.c.l.b16 %v1217
    %v1378 = vunpack.c.l.b16 %v1218
    %v1379 = vunpack.c.l.b16 %v1219
    %v1380 = vunpack.c.l.b16 %v1220
    %v1381 = vunpack.c.l.b16 %v1221
    %v1382 = vunpack.c.l.b16 %v1222
    %v1383 = vunpack.c.l.b16 %v1223
    %v1384 = vunpack.c.l.b16 %v1224
    %v1385 = vunpack.c.l.b16 %v1225
    %v1386 = vunpack.c.l.b16 %v1226
    %v1387 = vunpack.c.l.b16 %v1227
    %v1388 = vunpack.c.l.b16 %v1228
    %v1389 = vunpack.c.l.b16 %v1229
    %v1390 = vunpack.c.l.b16 %v1230
    %v1391 = vunpack.c.l.b16 %v1231
    %v1392 = vunpack.c.l.b16 %v1232
    %v1393 = vunpack.c.l.b16 %v1233
    %v1394 = vunpack.c.l.b16 %v1234
    %v1395 = vunpack.c.l.b16 %v1235
    %v1396 = vunpack.c.l.b16 %v1236
    %v1397 = vunpack.c.l.b16 %v1237
    %v1398 = vunpack.c.l.b16 %v1238
    %v1399 = vunpack.c.l.b16 %v1239
    %v1400 = vunpack.c.l.b16 %v1240
    %v1401 = vunpack.c.l.b16 %v1241
    %v1402 = vunpack.c.l.b16 %v1242
    %v1403 = vunpack.c.l.b16 %v1243
    %v1404 = vunpack.c.l.b16 %v1244
    %v1405 = vunpack.c.l.b16 %v1245
    %v1406 = vunpack.c.l.b16 %v1246
    %v1407 = vunpack.c.l.b16 %v1247
    %v1408 = vunpack.c.l.b16 %v1248
    %v1409 = vunpack.c.l.b16 %v1249
    %v1410 = vunpack.c.l.b16 %v1250
    %v1411 = vunpack.c.l.b16 %v1251
    %v1412 = vunpack.c.l.b16 %v1252
    %v1413 = vunpack.c.l.b16 %v1253
    %v1414 = vunpack.c.l.b16 %v1254
    %v1415 = vunpack.c.l.b16 %v1255
    %v1416 = vunpack.c.l.b16 %v1256
    %v1417 = vunpack.c.l.b16 %v1257
    %v1418 = vunpack.c.l.b16 %v1258
    %v1419 = vunpack.c.l.b16 %v1259
    %v1420 = vunpack.c.l.b16 %v1260
    %v1421 = vunpack.c.l.b16 %v1261
    %v1422 = vunpack.c.l.b16 %v1262
    %v1423 = vunpack.c.l.b16 %v1263
    %v1424 = vunpack.c.l.b16 %v1264
    %v1425 = vunpack.c.l.b16 %v1265
    %v1426 = vunpack.c.l.b16 %v1266
    %v1427 = vunpack.c.l.b16 %v1267
    %v1428 = vunpack.c.l.b16 %v1268
    %v1429 = vunpack.c.l.b16 %v1269
    %v1430 = vunpack.c.l.b16 %v1270
    %v1431 = vunpack.c.l.b16 %v1271
    %v1432 = vunpack.c.l.b16 %v1272
    %v1433 = vunpack.c.l.b16 %v1273
    %v1434 = vunpack.c.l.b16 %v1274
    %v1435 = vunpack.c.l.b16 %v1275
    %v1436 = vunpack.c.l.b16 %v1276
    %v1437 = vunpack.c.l.b16 %v1277
    %v1438 = vunpack.c.l.b16 %v1278
    %v1439 = vunpack.c.l.b16 %v1279
    %v1440 = vunpack.c.l.b16 %v1280
    %v1441 = vunpack.c.l.b16 %v1281
    %v1442 = vunpack.c.l.b16 %v1282
    %v1443 = vunpack.c.l.b16 %v1283
    %v1444 = vunpack.c.l.b16 %v1284
    %v1445 = vunpack.c.l.b16 %v1285
    %v1446 = vunpack.c.l.b16 %v1286
    %v1447 = vunpack.c.l.b16 %v1287
    %v1448 = vunpack.c.l.b16 %v1288
    %v1449 = vunpack.c.l.b16 %v1289
    %v1450 = vunpack.c.l.b16 %v1290
    %v1451 = vunpack.c.l.b16 %v1291
    %v1452 = vunpack.c.l.b16 %v1292
    %v1453 = vunpack.c.l.b16 %v1293
    %v1454 = vunpack.c.l.b16 %v1294
    %v1455 = vunpack.c.l.b16 %v1295
    %v1456 = vpack.c.b16 %v1377, %v1376
    %v1457 = vpack.c.b16 %v1379, %v1378
    %v1458 = vpack.c.b16 %v1381, %v1380
    %v1459 = vpack.c.b16 %v1383, %v1382
    %v1460 = vpack.c.b16 %v1385, %v1384
    %v1461 = vpack.c.b16 %v1387, %v1386
    %v1462 = vpack.c.b16 %v1389, %v1388
    %v1463 = vpack.c.b16 %v1391, %v1390
    %v1464 = vpack.c.b16 %v1393, %v1392
    %v1465 = vpack.c.b16 %v1395, %v1394
    %v1466 = vpack.c.b16 %v1397, %v1396
    %v1467 = vpack.c.b16 %v1399, %v1398
    %v1468 = vpack.c.b16 %v1401, %v1400
    %v1469 = vpack.c.b16 %v1403, %v1402
    %v1470 = vpack.c.b16 %v1405, %v1404
    %v1471 = vpack.c.b16 %v1407, %v1406
    %v1472 = vpack.c.b16 %v1409, %v1408
    %v1473 = vpack.c.b16 %v1411, %v1410
    %v1474 = vpack.c.b16 %v1413, %v1412
    %v1475 = vpack.c.b16 %v1415, %v1414
    %v1476 = vpack.c.b16 %v1417, %v1416
    %v1477 = vpack.c.b16 %v1419, %v1418
    %v1478 = vpack.c.b16 %v1421, %v1420
    %v1479 = vpack.c.b16 %v1423, %v1422
    %v1480 = vpack.c.b16 %v1425, %v1424
    %v1481 = vpack.c.b16 %v1427, %v1426
    %v1482 = vpack.c.b16 %v1429, %v1428
    %v1483 = vpack.c.b16 %v1431, %v1430
    %v1484 = vpack.c.b16 %v1433, %v1432
    %v1485 = vpack.c.b16 %v1435, %v1434
    %v1486 = vpack.c.b16 %v1437, %v1436
    %v1487 = vpack.c.b16 %v1439, %v1438
    %v1488 = vpack.c.b16 %v1441, %v1440
    %v1489 = vpack.c.b16 %v1443, %v1442
    %v1490 = vpack.c.b16 %v1445, %v1444
    %v1491 = vpack.c.b16 %v1447, %v1446
    %v1492 = vpack.c.b16 %v1449, %v1448
    %v1493 = vpack.c.b16 %v1451, %v1450
    %v1494 = vpack.c.b16 %v1453, %v1452
    %v1495 = vpack.c.b16 %v1455, %v1454
    %1536 = vmatprep.subr.bf16.mxu0 0
    %1537 = vmatpush1.bf16.msra.mxu0 %v1456
    %1538 = vmatprep.subr.bf16.mxu0 0
    %1539 = vmatpush1.bf16.msra.mxu0 %v1457
    %1540 = vmatprep.subr.bf16.mxu0 0
    %1541 = vmatpush1.bf16.msra.mxu0 %v1458
    %1542 = vmatprep.subr.bf16.mxu0 0
    %1543 = vmatpush1.bf16.msra.mxu0 %v1459
    %1544 = vmatprep.subr.bf16.mxu0 0
    %1545 = vmatpush1.bf16.msra.mxu0 %v1460
    %1546 = vmatprep.subr.bf16.mxu0 0
    %1547 = vmatpush1.bf16.msra.mxu0 %v1461
    %1548 = vmatprep.subr.bf16.mxu0 0
    %1549 = vmatpush1.bf16.msra.mxu0 %v1462
    %1550 = vmatprep.subr.bf16.mxu0 0
    %1551 = vmatpush1.bf16.msra.mxu0 %v1463
    %1552 = vmatprep.subr.bf16.mxu0 0
    %1553 = vmatpush1.bf16.msra.mxu0 %v1464
    %1554 = vmatprep.subr.bf16.mxu0 0
    %1555 = vmatpush1.bf16.msra.mxu0 %v1465
    %1556 = vmatprep.subr.bf16.mxu0 0
    %1557 = vmatpush1.bf16.msra.mxu0 %v1466
    %1558 = vmatprep.subr.bf16.mxu0 0
    %1559 = vmatpush1.bf16.msra.mxu0 %v1467
    %1560 = vmatprep.subr.bf16.mxu0 0
    %1561 = vmatpush1.bf16.msra.mxu0 %v1468
    %1562 = vmatprep.subr.bf16.mxu0 0
    %1563 = vmatpush1.bf16.msra.mxu0 %v1469
    %1564 = vmatprep.subr.bf16.mxu0 0
    %1565 = vmatpush1.bf16.msra.mxu0 %v1470
    %1566 = vmatprep.subr.bf16.mxu0 0
    %1567 = vmatpush1.bf16.msra.mxu0 %v1471
    %1568 = vmatprep.mubr.bf16.mxu0 %v1194
    %1569 = vmatmul.mubr.bf16.gmra.mrb[0].mxu0 %v1182
    %v1570 = vpop.f32.mrb[0].mxu0
    %v1571 = vadd.f32 0.0, %v1570
    %v1572 = vpop.f32.mrb[0].mxu0
    %v1573 = vpop.f32.mrb[0].mxu0
    %v1574 = vadd.f32 0.0, %v1573
    %v1575 = vpop.f32.mrb[0].mxu0
    %1576 = vmatprep.mubr.bf16.mxu0 %v1195
    %1577 = vmatmul.mubr.bf16.gmra.mrb[0].mxu0 %v1183
    %v1578 = vpop.f32.mrb[0].mxu0
    %v1579 = vadd.f32 0.0, %v1578
    %v1580 = vpop.f32.mrb[0].mxu0
    %v1581 = vpop.f32.mrb[0].mxu0
    %v1582 = vadd.f32 0.0, %v1581
    %v1583 = vpop.f32.mrb[0].mxu0
    %1584 = vmatprep.mubr.bf16.mxu0 %v1196
    %1585 = vmatmul.mubr.bf16.gmra.mrb[0].mxu0 %v1184
    %v1586 = vpop.f32.mrb[0].mxu0
    %v1587 = vadd.f32 0.0, %v1586
    %v1588 = vpop.f32.mrb[0].mxu0
    %v1589 = vpop.f32.mrb[0].mxu0
    %v1590 = vadd.f32 0.0, %v1589
    %v1591 = vpop.f32.mrb[0].mxu0
    %1592 = vmatprep.mubr.bf16.mxu0 %v1197
    %1593 = vmatmul.mubr.bf16.gmra.mrb[0].mxu0 %v1185
    %v1594 = vpop.f32.mrb[0].mxu0
    %v1595 = vadd.f32 0.0, %v1594
    %v1596 = vpop.f32.mrb[0].mxu0
    %v1597 = vpop.f32.mrb[0].mxu0
    %v1598 = vadd.f32 0.0, %v1597
    %v1599 = vpop.f32.mrb[0].mxu0
    %1600 = vmatprep.mubr.bf16.mxu0 %v1198
    %1601 = vmatmul.mubr.bf16.gmra.mrb[0].mxu0 %v1186
    %v1602 = vpop.f32.mrb[0].mxu0
    %v1603 = vadd.f32 0.0, %v1602
    %v1604 = vpop.f32.mrb[0].mxu0
    %v1605 = vpop.f32.mrb[0].mxu0
    %v1606 = vadd.f32 0.0, %v1605
    %v1607 = vpop.f32.mrb[0].mxu0
    %1608 = vdwg.mxu0
    %1609 = vmatprep.subr.bf16.mxu0 0
    %1610 = vmatpush1.bf16.msra.mxu0 %v1472
    %1611 = vmatprep.subr.bf16.mxu0 0
    %1612 = vmatpush1.bf16.msra.mxu0 %v1473
    %1613 = vmatprep.subr.bf16.mxu0 0
    %1614 = vmatpush1.bf16.msra.mxu0 %v1474
    %1615 = vmatprep.subr.bf16.mxu0 0
    %1616 = vmatpush1.bf16.msra.mxu0 %v1475
    %1617 = vmatprep.subr.bf16.mxu0 0
    %1618 = vmatpush1.bf16.msra.mxu0 %v1476
    %1619 = vmatprep.subr.bf16.mxu0 0
    %1620 = vmatpush1.bf16.msra.mxu0 %v1477
    %1621 = vmatprep.subr.bf16.mxu0 0
    %1622 = vmatpush1.bf16.msra.mxu0 %v1478
    %1623 = vmatprep.subr.bf16.mxu0 0
    %1624 = vmatpush1.bf16.msra.mxu0 %v1479
    %1625 = vmatprep.subr.bf16.mxu0 0
    %1626 = vmatpush1.bf16.msra.mxu0 %v1480
    %1627 = vmatprep.subr.bf16.mxu0 0
    %1628 = vmatpush1.bf16.msra.mxu0 %v1481
    %1629 = vmatprep.subr.bf16.mxu0 0
    %1630 = vmatpush1.bf16.msra.mxu0 %v1482
    %1631 = vmatprep.subr.bf16.mxu0 0
    %1632 = vmatpush1.bf16.msra.mxu0 %v1483
    %1633 = vmatprep.subr.bf16.mxu0 0
    %1634 = vmatpush1.bf16.msra.mxu0 %v1484
    %1635 = vmatprep.subr.bf16.mxu0 0
    %1636 = vmatpush1.bf16.msra.mxu0 %v1485
    %1637 = vmatprep.subr.bf16.mxu0 0
    %1638 = vmatpush1.bf16.msra.mxu0 %v1486
    %1639 = vmatprep.subr.bf16.mxu0 0
    %1640 = vmatpush1.bf16.msra.mxu0 %v1487
    %1641 = vmatprep.mubr.bf16.mxu0 %v1195
    %1642 = vmatmul.mubr.bf16.gmra.mrb[0].mxu0 %v1183
    %v1643 = vpop.f32.mrb[0].mxu0
    %v1644 = vadd.f32 %v1571, %v1643
    %v1645 = vpop.f32.mrb[0].mxu0
    %v1646 = vpop.f32.mrb[0].mxu0
    %v1647 = vadd.f32 %v1574, %v1646
    %v1648 = vpop.f32.mrb[0].mxu0
    %1649 = vmatprep.mubr.bf16.mxu0 %v1196
    %1650 = vmatmul.mubr.bf16.gmra.mrb[0].mxu0 %v1184
    %v1651 = vpop.f32.mrb[0].mxu0
    %v1652 = vadd.f32 %v1579, %v1651
    %v1653 = vpop.f32.mrb[0].mxu0
    %v1654 = vpop.f32.mrb[0].mxu0
    %v1655 = vadd.f32 %v1582, %v1654
    %v1656 = vpop.f32.mrb[0].mxu0
    %1657 = vmatprep.mubr.bf16.mxu0 %v1197
    %1658 = vmatmul.mubr.bf16.gmra.mrb[0].mxu0 %v1185
    %v1659 = vpop.f32.mrb[0].mxu0
    %v1660 = vadd.f32 %v1587, %v1659
    %v1661 = vpop.f32.mrb[0].mxu0
    %v1662 = vpop.f32.mrb[0].mxu0
    %v1663 = vadd.f32 %v1590, %v1662
    %v1664 = vpop.f32.mrb[0].mxu0
    %1665 = vmatprep.mubr.bf16.mxu0 %v1198
    %1666 = vmatmul.mubr.bf16.gmra.mrb[0].mxu0 %v1186
    %v1667 = vpop.f32.mrb[0].mxu0
    %v1668 = vadd.f32 %v1595, %v1667
    %v1669 = vpop.f32.mrb[0].mxu0
    %v1670 = vpop.f32.mrb[0].mxu0
    %v1671 = vadd.f32 %v1598, %v1670
    %v1672 = vpop.f32.mrb[0].mxu0
    %1673 = vmatprep.mubr.bf16.mxu0 %v1210
    %1674 = vmatmul.mubr.bf16.gmra.mrb[0].mxu0 %v1206
    %v1675 = vpop.f32.mrb[0].mxu0
    %v1676 = vadd.f32 %v1603, %v1675
    %v1677 = vpop.f32.mrb[0].mxu0
    %v1678 = vpop.f32.mrb[0].mxu0
    %v1679 = vadd.f32 %v1606, %v1678
    %v1680 = vpop.f32.mrb[0].mxu0
    %1681 = vdwg.mxu0
    %1682 = vmatprep.subr.bf16.mxu0 0
    %1683 = vmatpush1.bf16.msra.mxu0 %v1488
    %1684 = vmatprep.subr.bf16.mxu0 0
    %1685 = vmatpush1.bf16.msra.mxu0 %v1489
    %1686 = vmatprep.subr.bf16.mxu0 0
    %1687 = vmatpush1.bf16.msra.mxu0 %v1490
    %1688 = vmatprep.subr.bf16.mxu0 0
    %1689 = vmatpush1.bf16.msra.mxu0 %v1491
    %1690 = vmatprep.subr.bf16.mxu0 0
    %1691 = vmatpush1.bf16.msra.mxu0 %v1492
    %1692 = vmatprep.subr.bf16.mxu0 0
    %1693 = vmatpush1.bf16.msra.mxu0 %v1493
    %1694 = vmatprep.subr.bf16.mxu0 0
    %1695 = vmatpush1.bf16.msra.mxu0 %v1494
    %1696 = vmatprep.subr.bf16.mxu0 0
    %1697 = vmatpush1.bf16.msra.mxu0 %v1495
    %1698 = vmatprep.subr.bf16.mxu0 0
    %1699 = vmatpush1.bf16.msra.mxu0 0
    %1700 = vmatprep.subr.bf16.mxu0 0
    %1701 = vmatpush1.bf16.msra.mxu0 0
    %1702 = vmatprep.subr.bf16.mxu0 0
    %1703 = vmatpush1.bf16.msra.mxu0 0
    %1704 = vmatprep.subr.bf16.mxu0 0
    %1705 = vmatpush1.bf16.msra.mxu0 0
    %1706 = vmatprep.subr.bf16.mxu0 0
    %1707 = vmatpush1.bf16.msra.mxu0 0
    %1708 = vmatprep.subr.bf16.mxu0 0
    %1709 = vmatpush1.bf16.msra.mxu0 0
    %1710 = vmatprep.subr.bf16.mxu0 0
    %1711 = vmatpush1.bf16.msra.mxu0 0
    %1712 = vmatprep.subr.bf16.mxu0 0
    %1713 = vmatpush1.bf16.msra.mxu0 0
    %1714 = vmatprep.mubr.bf16.mxu0 0
    %1715 = vmatmul.mubr.bf16.gmra.mrb[0].mxu0 %v1184
    %v1716 = vpop.f32.mrb[0].mxu0
    %v1717 = vadd.f32 %v1644, %v1716
    %v1718 = vpop.f32.mrb[0].mxu0
    %v1719 = vpop.f32.mrb[0].mxu0
    %v1720 = vadd.f32 %v1647, %v1719
    %v1721 = vpop.f32.mrb[0].mxu0
    %1722 = vmatprep.mubr.bf16.mxu0 0
    %1723 = vmatmul.mubr.bf16.gmra.mrb[0].mxu0 %v1185
    %v1724 = vpop.f32.mrb[0].mxu0
    %v1725 = vadd.f32 %v1652, %v1724
    %v1726 = vpop.f32.mrb[0].mxu0
    %v1727 = vpop.f32.mrb[0].mxu0
    %v1728 = vadd.f32 %v1655, %v1727
    %v1729 = vpop.f32.mrb[0].mxu0
    %1730 = vmatprep.mubr.bf16.mxu0 0
    %1731 = vmatmul.mubr.bf16.gmra.mrb[0].mxu0 %v1186
    %v1732 = vpop.f32.mrb[0].mxu0
    %v1733 = vadd.f32 %v1660, %v1732
    %v1734 = vpop.f32.mrb[0].mxu0
    %v1735 = vpop.f32.mrb[0].mxu0
    %v1736 = vadd.f32 %v1663, %v1735
    %v1737 = vpop.f32.mrb[0].mxu0
    %1738 = vmatprep.mubr.bf16.mxu0 0
    %1739 = vmatmul.mubr.bf16.gmra.mrb[0].mxu0 %v1206
    %v1740 = vpop.f32.mrb[0].mxu0
    %v1741 = vadd.f32 %v1668, %v1740
    %v1742 = vpop.f32.mrb[0].mxu0
    %v1743 = vpop.f32.mrb[0].mxu0
    %v1744 = vadd.f32 %v1671, %v1743
    %v1745 = vpop.f32.mrb[0].mxu0
    %1746 = vmatprep.mubr.bf16.mxu0 0
    %1747 = vmatmul.mubr.bf16.gmra.mrb[0].mxu0 %v1214
    %v1748 = vpop.f32.mrb[0].mxu0
    %v1749 = vadd.f32 %v1676, %v1748
    %v1750 = vpop.f32.mrb[0].mxu0
    %v1751 = vpop.f32.mrb[0].mxu0
    %v1752 = vadd.f32 %v1679, %v1751
    %v1753 = vpop.f32.mrb[0].mxu0
    %1754 = vdwg.mxu0
    %v1755 = vld [vmem:[%s5] sm:$0x1]
    %v1757 = vlaneseq
    %v1758 = vshrl.u32 %v1757, 7
    %v1759 = vsub.s32 0, %v1758
    %v1760 = vrot.slane %v1755, %v1759
    %v1762 = vmul.f32 %v1717, %v1760
    %v1763 = vmul.f32 %v1720, %v1760
    %v1764 = vmul.f32 %v1725, %v1760
    %v1765 = vmul.f32 %v1728, %v1760
    %v1766 = vmul.f32 %v1733, %v1760
    %v1767 = vmul.f32 %v1736, %v1760
    %v1768 = vmul.f32 %v1741, %v1760
    %v1769 = vmul.f32 %v1744, %v1760
    %v1770 = vmul.f32 %v1749, %v1760
    %v1771 = vmul.f32 %v1752, %v1760
    %v1772 = vld [vmem:[%s6] sm:$0x1]
    %v1774 = vlaneseq
    %v1775 = vshrl.u32 %v1774, 7
    %v1776 = vsub.s32 0, %v1775
    %v1777 = vrot.slane %v1772, %v1776
    %v1779 = vadd.f32 %v1762, %v1777
    %v1780 = vadd.f32 %v1763, %v1777
    %v1781 = vadd.f32 %v1764, %v1777
    %v1782 = vadd.f32 %v1765, %v1777
    %v1783 = vadd.f32 %v1766, %v1777
    %v1784 = vadd.f32 %v1767, %v1777
    %v1785 = vadd.f32 %v1768, %v1777
    %v1786 = vadd.f32 %v1769, %v1777
    %v1787 = vadd.f32 %v1770, %v1777
    %v1788 = vadd.f32 %v1771, %v1777
    %v1789 = vmax.f32 %v1779, 0.0
    %v1790 = vmax.f32 %v1780, 0.0
    %v1791 = vmax.f32 %v1781, 0.0
    %v1792 = vmax.f32 %v1782, 0.0
    %v1793 = vmax.f32 %v1783, 0.0
    %v1794 = vmax.f32 %v1784, 0.0
    %v1795 = vmax.f32 %v1785, 0.0
    %v1796 = vmax.f32 %v1786, 0.0
    %v1797 = vmax.f32 %v1787, 0.0
    %v1798 = vmax.f32 %v1788, 0.0
    %v1799 = vmax.f32 %v1789, %v1790
    %v1800 = vmax.f32 %v1791, %v1792
    %v1801 = vmax.f32 %v1793, %v1794
    %v1802 = vmax.f32 %v1795, %v1796
    %v1803 = vmax.f32 %v1797, %v1798
    %1809 = vrot.lane.b32.xlu0 %v1799, 127
    %v1810 = vpop.permute.xlu0 %1809
    %1811 = vrot.lane.b32.xlu0 %v1800, 127
    %v1812 = vpop.permute.xlu0 %1811
    %1813 = vrot.lane.b32.xlu0 %v1801, 127
    %v1814 = vpop.permute.xlu0 %1813
    %1815 = vrot.lane.b32.xlu0 %v1802, 127
    %v1816 = vpop.permute.xlu0 %1815
    %1817 = vrot.lane.b32.xlu0 %v1803, 127
    %v1818 = vpop.permute.xlu0 %1817
    %v1824 = vmax.f32 %v1799, %v1810
    %v1825 = vmax.f32 %v1800, %v1812
    %v1826 = vmax.f32 %v1801, %v1814
    %v1827 = vmax.f32 %v1802, %v1816
    %v1828 = vmax.f32 %v1803, %v1818
    %v1829 = vpack.c.bf16 %v1824, %v1824
    %v1830 = vpack.c.bf16 %v1825, %v1825
    %v1831 = vpack.c.bf16 %v1826, %v1826
    %v1832 = vpack.c.bf16 %v1827, %v1827
    %v1833 = vpack.c.bf16 %v1828, %v1828
    %v1834 = vld [vmem:[%s7] sm:$0xf]
    %v1835 = vld [vmem:[%s7 + $0x4] sm:$0xf]
    %v1836 = vld [vmem:[%s7 + $0x8] sm:$0xf]
    %v1837 = vld [vmem:[%s7 + $0xc] sm:$0xf]
    %v1838 = vld [vmem:[%s7 + $0x10] sm:$0xf]
    %v1839 = vld [vmem:[%s7 + $0x14] sm:$0xf]
    %v1840 = vld [vmem:[%s7 + $0x18] sm:$0xf]
    %v1841 = vld [vmem:[%s7 + $0x1c] sm:$0xf]
    %v1842 = vld [vmem:[%s7 + $0x20] sm:$0xf]
    %v1843 = vld [vmem:[%s7 + $0x24] sm:$0xf]
    %v1844 = vld [vmem:[%s7 + $0x28] sm:$0xf]
    %v1845 = vld [vmem:[%s7 + $0x2c] sm:$0xf]
    %v1846 = vld [vmem:[%s7 + $0x30] sm:$0xf]
    %v1847 = vld [vmem:[%s7 + $0x34] sm:$0xf]
    %v1848 = vld [vmem:[%s7 + $0x38] sm:$0xf]
    %v1849 = vld [vmem:[%s7 + $0x3c] sm:$0xf]
    %v1850 = vld [vmem:[%s7 + $0x40] sm:$0xf]
    %v1851 = vld [vmem:[%s7 + $0x44] sm:$0xf]
    %v1852 = vld [vmem:[%s7 + $0x48] sm:$0xf]
    %v1853 = vld [vmem:[%s7 + $0x4c] sm:$0xf]
    %v1854 = vld [vmem:[%s7 + $0x50] sm:$0xf]
    %v1855 = vld [vmem:[%s7 + $0x54] sm:$0xf]
    %v1856 = vld [vmem:[%s7 + $0x58] sm:$0xf]
    %v1857 = vld [vmem:[%s7 + $0x5c] sm:$0xf]
    %v1858 = vld [vmem:[%s7 + $0x60] sm:$0xf]
    %v1859 = vld [vmem:[%s7 + $0x64] sm:$0xf]
    %v1860 = vld [vmem:[%s7 + $0x68] sm:$0xf]
    %v1861 = vld [vmem:[%s7 + $0x6c] sm:$0xf]
    %v1862 = vld [vmem:[%s7 + $0x70] sm:$0xf]
    %v1863 = vld [vmem:[%s7 + $0x74] sm:$0xf]
    %v1864 = vld [vmem:[%s7 + $0x78] sm:$0xf]
    %v1865 = vld [vmem:[%s7 + $0x7c] sm:$0xf]
    %v1866 = vld [vmem:[%s7 + $0x80] sm:$0xf]
    %v1867 = vld [vmem:[%s7 + $0x84] sm:$0xf]
    %v1868 = vld [vmem:[%s7 + $0x88] sm:$0xf]
    %v1869 = vld [vmem:[%s7 + $0x8c] sm:$0xf]
    %v1870 = vld [vmem:[%s7 + $0x90] sm:$0xf]
    %v1871 = vld [vmem:[%s7 + $0x94] sm:$0xf]
    %v1872 = vld [vmem:[%s7 + $0x98] sm:$0xf]
    %v1873 = vld [vmem:[%s7 + $0x9c] sm:$0xf]
    %v1874 = vld [vmem:[%s7 + $0xa0] sm:$0xf]
    %v1875 = vld [vmem:[%s7 + $0xa4] sm:$0xf]
    %v1876 = vld [vmem:[%s7 + $0xa8] sm:$0xf]
    %v1877 = vld [vmem:[%s7 + $0xac] sm:$0xf]
    %v1878 = vld [vmem:[%s7 + $0xb0] sm:$0xf]
    %v1879 = vld [vmem:[%s7 + $0xb4] sm:$0xf]
    %v1880 = vld [vmem:[%s7 + $0xb8] sm:$0xf]
    %v1881 = vld [vmem:[%s7 + $0xbc] sm:$0xf]
    %v1882 = vld [vmem:[%s7 + $0xc0] sm:$0xf]
    %v1883 = vld [vmem:[%s7 + $0xc4] sm:$0xf]
    %v1884 = vld [vmem:[%s7 + $0xc8] sm:$0xf]
    %v1885 = vld [vmem:[%s7 + $0xcc] sm:$0xf]
    %v1886 = vld [vmem:[%s7 + $0xd0] sm:$0xf]
    %v1887 = vld [vmem:[%s7 + $0xd4] sm:$0xf]
    %v1888 = vld [vmem:[%s7 + $0xd8] sm:$0xf]
    %v1889 = vld [vmem:[%s7 + $0xdc] sm:$0xf]
    %v1890 = vld [vmem:[%s7 + $0xe0] sm:$0xf]
    %v1891 = vld [vmem:[%s7 + $0xe4] sm:$0xf]
    %v1892 = vld [vmem:[%s7 + $0xe8] sm:$0xf]
    %v1893 = vld [vmem:[%s7 + $0xec] sm:$0xf]
    %v1894 = vld [vmem:[%s7 + $0xf0] sm:$0xf]
    %v1895 = vld [vmem:[%s7 + $0xf4] sm:$0xf]
    %v1896 = vld [vmem:[%s7 + $0xf8] sm:$0xf]
    %v1897 = vld [vmem:[%s7 + $0xfc] sm:$0xf]
    %v1898 = vld [vmem:[%s7 + $0x100] sm:$0xf]
    %v1899 = vld [vmem:[%s7 + $0x104] sm:$0xf]
    %v1900 = vld [vmem:[%s7 + $0x108] sm:$0xf]
    %v1901 = vld [vmem:[%s7 + $0x10c] sm:$0xf]
    %v1902 = vld [vmem:[%s7 + $0x110] sm:$0xf]
    %v1903 = vld [vmem:[%s7 + $0x114] sm:$0xf]
    %v1904 = vld [vmem:[%s7 + $0x118] sm:$0xf]
    %v1905 = vld [vmem:[%s7 + $0x11c] sm:$0xf]
    %v1906 = vld [vmem:[%s7 + $0x120] sm:$0xf]
    %v1907 = vld [vmem:[%s7 + $0x124] sm:$0xf]
    %v1908 = vld [vmem:[%s7 + $0x128] sm:$0xf]
    %v1909 = vld [vmem:[%s7 + $0x12c] sm:$0xf]
    %v1910 = vld [vmem:[%s7 + $0x130] sm:$0xf]
    %v1911 = vld [vmem:[%s7 + $0x134] sm:$0xf]
    %v1912 = vld [vmem:[%s7 + $0x138] sm:$0xf]
    %v1913 = vld [vmem:[%s7 + $0x13c] sm:$0xf]
    %v1914 = vld [vmem:[%s8] sm:$0x1]
    %v1916 = vlaneseq
    %v1917 = vshrl.u32 %v1916, 7
    %v1918 = vsub.s32 0, %v1917
    %v1919 = vrot.slane %v1914, %v1918
    %v2001 = vunpack.c.l.b16 %v1834
    %v2002 = vunpack.c.l.b16 %v1835
    %v2003 = vunpack.c.l.b16 %v1836
    %v2004 = vunpack.c.l.b16 %v1837
    %v2005 = vunpack.c.l.b16 %v1838
    %v2006 = vunpack.c.l.b16 %v1839
    %v2007 = vunpack.c.l.b16 %v1840
    %v2008 = vunpack.c.l.b16 %v1841
    %v2009 = vunpack.c.l.b16 %v1842
    %v2010 = vunpack.c.l.b16 %v1843
    %v2011 = vunpack.c.l.b16 %v1844
    %v2012 = vunpack.c.l.b16 %v1845
    %v2013 = vunpack.c.l.b16 %v1846
    %v2014 = vunpack.c.l.b16 %v1847
    %v2015 = vunpack.c.l.b16 %v1848
    %v2016 = vunpack.c.l.b16 %v1849
    %v2017 = vunpack.c.l.b16 %v1850
    %v2018 = vunpack.c.l.b16 %v1851
    %v2019 = vunpack.c.l.b16 %v1852
    %v2020 = vunpack.c.l.b16 %v1853
    %v2021 = vunpack.c.l.b16 %v1854
    %v2022 = vunpack.c.l.b16 %v1855
    %v2023 = vunpack.c.l.b16 %v1856
    %v2024 = vunpack.c.l.b16 %v1857
    %v2025 = vunpack.c.l.b16 %v1858
    %v2026 = vunpack.c.l.b16 %v1859
    %v2027 = vunpack.c.l.b16 %v1860
    %v2028 = vunpack.c.l.b16 %v1861
    %v2029 = vunpack.c.l.b16 %v1862
    %v2030 = vunpack.c.l.b16 %v1863
    %v2031 = vunpack.c.l.b16 %v1864
    %v2032 = vunpack.c.l.b16 %v1865
    %v2033 = vunpack.c.l.b16 %v1866
    %v2034 = vunpack.c.l.b16 %v1867
    %v2035 = vunpack.c.l.b16 %v1868
    %v2036 = vunpack.c.l.b16 %v1869
    %v2037 = vunpack.c.l.b16 %v1870
    %v2038 = vunpack.c.l.b16 %v1871
    %v2039 = vunpack.c.l.b16 %v1872
    %v2040 = vunpack.c.l.b16 %v1873
    %v2041 = vunpack.c.l.b16 %v1874
    %v2042 = vunpack.c.l.b16 %v1875
    %v2043 = vunpack.c.l.b16 %v1876
    %v2044 = vunpack.c.l.b16 %v1877
    %v2045 = vunpack.c.l.b16 %v1878
    %v2046 = vunpack.c.l.b16 %v1879
    %v2047 = vunpack.c.l.b16 %v1880
    %v2048 = vunpack.c.l.b16 %v1881
    %v2049 = vunpack.c.l.b16 %v1882
    %v2050 = vunpack.c.l.b16 %v1883
    %v2051 = vunpack.c.l.b16 %v1884
    %v2052 = vunpack.c.l.b16 %v1885
    %v2053 = vunpack.c.l.b16 %v1886
    %v2054 = vunpack.c.l.b16 %v1887
    %v2055 = vunpack.c.l.b16 %v1888
    %v2056 = vunpack.c.l.b16 %v1889
    %v2057 = vunpack.c.l.b16 %v1890
    %v2058 = vunpack.c.l.b16 %v1891
    %v2059 = vunpack.c.l.b16 %v1892
    %v2060 = vunpack.c.l.b16 %v1893
    %v2061 = vunpack.c.l.b16 %v1894
    %v2062 = vunpack.c.l.b16 %v1895
    %v2063 = vunpack.c.l.b16 %v1896
    %v2064 = vunpack.c.l.b16 %v1897
    %v2065 = vunpack.c.l.b16 %v1898
    %v2066 = vunpack.c.l.b16 %v1899
    %v2067 = vunpack.c.l.b16 %v1900
    %v2068 = vunpack.c.l.b16 %v1901
    %v2069 = vunpack.c.l.b16 %v1902
    %v2070 = vunpack.c.l.b16 %v1903
    %v2071 = vunpack.c.l.b16 %v1904
    %v2072 = vunpack.c.l.b16 %v1905
    %v2073 = vunpack.c.l.b16 %v1906
    %v2074 = vunpack.c.l.b16 %v1907
    %v2075 = vunpack.c.l.b16 %v1908
    %v2076 = vunpack.c.l.b16 %v1909
    %v2077 = vunpack.c.l.b16 %v1910
    %v2078 = vunpack.c.l.b16 %v1911
    %v2079 = vunpack.c.l.b16 %v1912
    %v2080 = vunpack.c.l.b16 %v1913
    %v2081 = vpack.c.b16 %v2002, %v2001
    %v2082 = vpack.c.b16 %v2004, %v2003
    %v2083 = vpack.c.b16 %v2006, %v2005
    %v2084 = vpack.c.b16 %v2008, %v2007
    %v2085 = vpack.c.b16 %v2010, %v2009
    %v2086 = vpack.c.b16 %v2012, %v2011
    %v2087 = vpack.c.b16 %v2014, %v2013
    %v2088 = vpack.c.b16 %v2016, %v2015
    %v2089 = vpack.c.b16 %v2018, %v2017
    %v2090 = vpack.c.b16 %v2020, %v2019
    %v2091 = vpack.c.b16 %v2022, %v2021
    %v2092 = vpack.c.b16 %v2024, %v2023
    %v2093 = vpack.c.b16 %v2026, %v2025
    %v2094 = vpack.c.b16 %v2028, %v2027
    %v2095 = vpack.c.b16 %v2030, %v2029
    %v2096 = vpack.c.b16 %v2032, %v2031
    %v2097 = vpack.c.b16 %v2034, %v2033
    %v2098 = vpack.c.b16 %v2036, %v2035
    %v2099 = vpack.c.b16 %v2038, %v2037
    %v2100 = vpack.c.b16 %v2040, %v2039
    %v2101 = vpack.c.b16 %v2042, %v2041
    %v2102 = vpack.c.b16 %v2044, %v2043
    %v2103 = vpack.c.b16 %v2046, %v2045
    %v2104 = vpack.c.b16 %v2048, %v2047
    %v2105 = vpack.c.b16 %v2050, %v2049
    %v2106 = vpack.c.b16 %v2052, %v2051
    %v2107 = vpack.c.b16 %v2054, %v2053
    %v2108 = vpack.c.b16 %v2056, %v2055
    %v2109 = vpack.c.b16 %v2058, %v2057
    %v2110 = vpack.c.b16 %v2060, %v2059
    %v2111 = vpack.c.b16 %v2062, %v2061
    %v2112 = vpack.c.b16 %v2064, %v2063
    %v2113 = vpack.c.b16 %v2066, %v2065
    %v2114 = vpack.c.b16 %v2068, %v2067
    %v2115 = vpack.c.b16 %v2070, %v2069
    %v2116 = vpack.c.b16 %v2072, %v2071
    %v2117 = vpack.c.b16 %v2074, %v2073
    %v2118 = vpack.c.b16 %v2076, %v2075
    %v2119 = vpack.c.b16 %v2078, %v2077
    %v2120 = vpack.c.b16 %v2080, %v2079
    %2161 = vmatprep.subr.bf16.mxu0 0
    %2162 = vmatpush1.bf16.msra.mxu0 %v2081
    %2163 = vmatprep.subr.bf16.mxu0 0
    %2164 = vmatpush1.bf16.msra.mxu0 %v2082
    %2165 = vmatprep.subr.bf16.mxu0 0
    %2166 = vmatpush1.bf16.msra.mxu0 %v2083
    %2167 = vmatprep.subr.bf16.mxu0 0
    %2168 = vmatpush1.bf16.msra.mxu0 %v2084
    %2169 = vmatprep.subr.bf16.mxu0 0
    %2170 = vmatpush1.bf16.msra.mxu0 %v2085
    %2171 = vmatprep.subr.bf16.mxu0 0
    %2172 = vmatpush1.bf16.msra.mxu0 %v2086
    %2173 = vmatprep.subr.bf16.mxu0 0
    %2174 = vmatpush1.bf16.msra.mxu0 %v2087
    %2175 = vmatprep.subr.bf16.mxu0 0
    %2176 = vmatpush1.bf16.msra.mxu0 %v2088
    %2177 = vmatprep.subr.bf16.mxu0 0
    %2178 = vmatpush1.bf16.msra.mxu0 %v2089
    %2179 = vmatprep.subr.bf16.mxu0 0
    %2180 = vmatpush1.bf16.msra.mxu0 %v2090
    %2181 = vmatprep.subr.bf16.mxu0 0
    %2182 = vmatpush1.bf16.msra.mxu0 %v2091
    %2183 = vmatprep.subr.bf16.mxu0 0
    %2184 = vmatpush1.bf16.msra.mxu0 %v2092
    %2185 = vmatprep.subr.bf16.mxu0 0
    %2186 = vmatpush1.bf16.msra.mxu0 %v2093
    %2187 = vmatprep.subr.bf16.mxu0 0
    %2188 = vmatpush1.bf16.msra.mxu0 %v2094
    %2189 = vmatprep.subr.bf16.mxu0 0
    %2190 = vmatpush1.bf16.msra.mxu0 %v2095
    %2191 = vmatprep.subr.bf16.mxu0 0
    %2192 = vmatpush1.bf16.msra.mxu0 %v2096
    %2193 = vmatprep.mubr.bf16.mxu0 %v1830
    %2194 = vmatmul.mubr.bf16.gmra.mrb[0].mxu0 %v1829
    %v2195 = vpop.f32.mrb[0].mxu0
    %v2196 = vadd.f32 %v1919, %v2195
    %v2197 = vpop.f32.mrb[0].mxu0
    %v2198 = vpop.f32.mrb[0].mxu0
    %v2199 = vpop.f32.mrb[0].mxu0
    %2200 = vdwg.mxu0
    %2201 = vmatprep.subr.bf16.mxu0 0
    %2202 = vmatpush1.bf16.msra.mxu0 %v2097
    %2203 = vmatprep.subr.bf16.mxu0 0
    %2204 = vmatpush1.bf16.msra.mxu0 %v2098
    %2205 = vmatprep.subr.bf16.mxu0 0
    %2206 = vmatpush1.bf16.msra.mxu0 %v2099
    %2207 = vmatprep.subr.bf16.mxu0 0
    %2208 = vmatpush1.bf16.msra.mxu0 %v2100
    %2209 = vmatprep.subr.bf16.mxu0 0
    %2210 = vmatpush1.bf16.msra.mxu0 %v2101
    %2211 = vmatprep.subr.bf16.mxu0 0
    %2212 = vmatpush1.bf16.msra.mxu0 %v2102
    %2213 = vmatprep.subr.bf16.mxu0 0
    %2214 = vmatpush1.bf16.msra.mxu0 %v2103
    %2215 = vmatprep.subr.bf16.mxu0 0
    %2216 = vmatpush1.bf16.msra.mxu0 %v2104
    %2217 = vmatprep.subr.bf16.mxu0 0
    %2218 = vmatpush1.bf16.msra.mxu0 %v2105
    %2219 = vmatprep.subr.bf16.mxu0 0
    %2220 = vmatpush1.bf16.msra.mxu0 %v2106
    %2221 = vmatprep.subr.bf16.mxu0 0
    %2222 = vmatpush1.bf16.msra.mxu0 %v2107
    %2223 = vmatprep.subr.bf16.mxu0 0
    %2224 = vmatpush1.bf16.msra.mxu0 %v2108
    %2225 = vmatprep.subr.bf16.mxu0 0
    %2226 = vmatpush1.bf16.msra.mxu0 %v2109
    %2227 = vmatprep.subr.bf16.mxu0 0
    %2228 = vmatpush1.bf16.msra.mxu0 %v2110
    %2229 = vmatprep.subr.bf16.mxu0 0
    %2230 = vmatpush1.bf16.msra.mxu0 %v2111
    %2231 = vmatprep.subr.bf16.mxu0 0
    %2232 = vmatpush1.bf16.msra.mxu0 %v2112
    %2233 = vmatprep.mubr.bf16.mxu0 %v1832
    %2234 = vmatmul.mubr.bf16.gmra.mrb[0].mxu0 %v1831
    %v2235 = vpop.f32.mrb[0].mxu0
    %v2236 = vadd.f32 %v2196, %v2235
    %v2237 = vpop.f32.mrb[0].mxu0
    %v2238 = vpop.f32.mrb[0].mxu0
    %v2239 = vpop.f32.mrb[0].mxu0
    %2240 = vdwg.mxu0
    %2241 = vmatprep.subr.bf16.mxu0 0
    %2242 = vmatpush1.bf16.msra.mxu0 %v2113
    %2243 = vmatprep.subr.bf16.mxu0 0
    %2244 = vmatpush1.bf16.msra.mxu0 %v2114
    %2245 = vmatprep.subr.bf16.mxu0 0
    %2246 = vmatpush1.bf16.msra.mxu0 %v2115
    %2247 = vmatprep.subr.bf16.mxu0 0
    %2248 = vmatpush1.bf16.msra.mxu0 %v2116
    %2249 = vmatprep.subr.bf16.mxu0 0
    %2250 = vmatpush1.bf16.msra.mxu0 %v2117
    %2251 = vmatprep.subr.bf16.mxu0 0
    %2252 = vmatpush1.bf16.msra.mxu0 %v2118
    %2253 = vmatprep.subr.bf16.mxu0 0
    %2254 = vmatpush1.bf16.msra.mxu0 %v2119
    %2255 = vmatprep.subr.bf16.mxu0 0
    %2256 = vmatpush1.bf16.msra.mxu0 %v2120
    %2257 = vmatprep.subr.bf16.mxu0 0
    %2258 = vmatpush1.bf16.msra.mxu0 0
    %2259 = vmatprep.subr.bf16.mxu0 0
    %2260 = vmatpush1.bf16.msra.mxu0 0
    %2261 = vmatprep.subr.bf16.mxu0 0
    %2262 = vmatpush1.bf16.msra.mxu0 0
    %2263 = vmatprep.subr.bf16.mxu0 0
    %2264 = vmatpush1.bf16.msra.mxu0 0
    %2265 = vmatprep.subr.bf16.mxu0 0
    %2266 = vmatpush1.bf16.msra.mxu0 0
    %2267 = vmatprep.subr.bf16.mxu0 0
    %2268 = vmatpush1.bf16.msra.mxu0 0
    %2269 = vmatprep.subr.bf16.mxu0 0
    %2270 = vmatpush1.bf16.msra.mxu0 0
    %2271 = vmatprep.subr.bf16.mxu0 0
    %2272 = vmatpush1.bf16.msra.mxu0 0
    %2273 = vmatprep.mubr.bf16.mxu0 0
    %2274 = vmatmul.mubr.bf16.gmra.mrb[0].mxu0 %v1833
    %v2275 = vpop.f32.mrb[0].mxu0
    %v2276 = vadd.f32 %v2236, %v2275
    %v2277 = vpop.f32.mrb[0].mxu0
    %v2278 = vpop.f32.mrb[0].mxu0
    %v2279 = vpop.f32.mrb[0].mxu0
    %2280 = vdwg.mxu0
    %v2281 = vmax.f32 %v2276, 0.0
    %v2282 = vpack.c.bf16 %v2281, %v2281
    %v2283 = vld [vmem:[%s9] sm:$0xf]
    %v2284 = vld [vmem:[%s9 + $0x4] sm:$0xf]
    %v2285 = vld [vmem:[%s9 + $0x8] sm:$0xf]
    %v2286 = vld [vmem:[%s9 + $0xc] sm:$0xf]
    %v2287 = vld [vmem:[%s9 + $0x10] sm:$0xf]
    %v2288 = vld [vmem:[%s9 + $0x14] sm:$0xf]
    %v2289 = vld [vmem:[%s9 + $0x18] sm:$0xf]
    %v2290 = vld [vmem:[%s9 + $0x1c] sm:$0xf]
    %v2291 = vld [vmem:[%s9 + $0x20] sm:$0xf]
    %v2292 = vld [vmem:[%s9 + $0x24] sm:$0xf]
    %v2293 = vld [vmem:[%s9 + $0x28] sm:$0xf]
    %v2294 = vld [vmem:[%s9 + $0x2c] sm:$0xf]
    %v2295 = vld [vmem:[%s9 + $0x30] sm:$0xf]
    %v2296 = vld [vmem:[%s9 + $0x34] sm:$0xf]
    %v2297 = vld [vmem:[%s9 + $0x38] sm:$0xf]
    %v2298 = vld [vmem:[%s9 + $0x3c] sm:$0xf]
    %v2299 = vld [vmem:[%s10] sm:$0x1]
    %v2301 = vlaneseq
    %v2302 = vshrl.u32 %v2301, 7
    %v2303 = vsub.s32 0, %v2302
    %v2304 = vrot.slane %v2299, %v2303
    %v2322 = vunpack.c.l.b16 %v2283
    %v2323 = vunpack.c.l.b16 %v2284
    %v2324 = vunpack.c.l.b16 %v2285
    %v2325 = vunpack.c.l.b16 %v2286
    %v2326 = vunpack.c.l.b16 %v2287
    %v2327 = vunpack.c.l.b16 %v2288
    %v2328 = vunpack.c.l.b16 %v2289
    %v2329 = vunpack.c.l.b16 %v2290
    %v2330 = vunpack.c.l.b16 %v2291
    %v2331 = vunpack.c.l.b16 %v2292
    %v2332 = vunpack.c.l.b16 %v2293
    %v2333 = vunpack.c.l.b16 %v2294
    %v2334 = vunpack.c.l.b16 %v2295
    %v2335 = vunpack.c.l.b16 %v2296
    %v2336 = vunpack.c.l.b16 %v2297
    %v2337 = vunpack.c.l.b16 %v2298
    %v2338 = vpack.c.b16 %v2323, %v2322
    %v2339 = vpack.c.b16 %v2325, %v2324
    %v2340 = vpack.c.b16 %v2327, %v2326
    %v2341 = vpack.c.b16 %v2329, %v2328
    %v2342 = vpack.c.b16 %v2331, %v2330
    %v2343 = vpack.c.b16 %v2333, %v2332
    %v2344 = vpack.c.b16 %v2335, %v2334
    %v2345 = vpack.c.b16 %v2337, %v2336
    %2354 = vmatprep.subr.bf16.mxu0 0
    %2355 = vmatpush1.bf16.msra.mxu0 %v2338
    %2356 = vmatprep.subr.bf16.mxu0 0
    %2357 = vmatpush1.bf16.msra.mxu0 %v2339
    %2358 = vmatprep.subr.bf16.mxu0 0
    %2359 = vmatpush1.bf16.msra.mxu0 %v2340
    %2360 = vmatprep.subr.bf16.mxu0 0
    %2361 = vmatpush1.bf16.msra.mxu0 %v2341
    %2362 = vmatprep.subr.bf16.mxu0 0
    %2363 = vmatpush1.bf16.msra.mxu0 %v2342
    %2364 = vmatprep.subr.bf16.mxu0 0
    %2365 = vmatpush1.bf16.msra.mxu0 %v2343
    %2366 = vmatprep.subr.bf16.mxu0 0
    %2367 = vmatpush1.bf16.msra.mxu0 %v2344
    %2368 = vmatprep.subr.bf16.mxu0 0
    %2369 = vmatpush1.bf16.msra.mxu0 %v2345
    %2370 = vmatprep.subr.bf16.mxu0 0
    %2371 = vmatpush1.bf16.msra.mxu0 0
    %2372 = vmatprep.subr.bf16.mxu0 0
    %2373 = vmatpush1.bf16.msra.mxu0 0
    %2374 = vmatprep.subr.bf16.mxu0 0
    %2375 = vmatpush1.bf16.msra.mxu0 0
    %2376 = vmatprep.subr.bf16.mxu0 0
    %2377 = vmatpush1.bf16.msra.mxu0 0
    %2378 = vmatprep.subr.bf16.mxu0 0
    %2379 = vmatpush1.bf16.msra.mxu0 0
    %2380 = vmatprep.subr.bf16.mxu0 0
    %2381 = vmatpush1.bf16.msra.mxu0 0
    %2382 = vmatprep.subr.bf16.mxu0 0
    %2383 = vmatpush1.bf16.msra.mxu0 0
    %2384 = vmatprep.subr.bf16.mxu0 0
    %2385 = vmatpush1.bf16.msra.mxu0 0
    %2386 = vmatprep.mubr.bf16.mxu0 0
    %2387 = vmatmul.mubr.bf16.gmra.mrb[0].mxu0 %v2282
    %v2388 = vpop.f32.mrb[0].mxu0
    %v2389 = vadd.f32 %v2304, %v2388
    %v2390 = vpop.f32.mrb[0].mxu0
    %v2391 = vpop.f32.mrb[0].mxu0
    %v2392 = vpop.f32.mrb[0].mxu0
    %2393 = vdwg.mxu0
    %2394 = vst [vmem:[%s11] sm:$0xff] %v2389
    // Predicated region
    $region50: #{forward.1} parent=1 // pred_check
      _
    $region51: #{forward.1} parent=1 // pred_check_branch
      %2396 = sbr.rel (0) target = $region53
    $region52: #{forward.1} parent=1 // pred_region
      _
    $region53: #{forward.1} parent=1 // pred_fallthru
      _
    // Predicated region
    $region54: #{forward.1} parent=1 // pred_check
      _
    $region55: #{forward.1} parent=1 // pred_check_branch
      %2398 = sbr.rel (0) target = $region57
    $region56: #{forward.1} parent=1 // pred_region
      _
    $region57: #{forward.1} parent=1 // pred_fallthru
      _
    %2399 = vsyncpa [#allocation3], 1

</llo_original>
